<compile_context>
chip_gen: v7x
topology: tpu7x:2x2x1
jax: 0.10.0
libtpu: 0.0.40
codegen_flags: <defaults>
</compile_context>

<pallas_src>
import functools

import jax
import jax.numpy as jnp
from jax import lax
from jax.experimental import pallas as pl
from jax.experimental.pallas import tpu as pltpu  # noqa: F401  (TPU backend)


# ---------------------------------------------------------------------------
# Model hyper-parameters (small, consistent with the module's constructor).
# ---------------------------------------------------------------------------
B = 2                 # batch
H_, W_ = 4, 8         # HW
N = H_ * W_           # sequence length = 32
C = 32                # dim
NUM_HEADS = 2
HEAD_DIM = C // NUM_HEADS
MLP_RATIO = 4.0
HID = int(C * MLP_RATIO)   # 128
EPS = 1e-6
SCALE = HEAD_DIM ** (-0.5)
T = B * N             # total tokens processed in one kernel invocation = 64

# Row layout of the packed per-block 1-D parameter slab (one (8,128) f32 page).
(_ROW_BPROJ, _ROW_LN1W, _ROW_LN1B, _ROW_B1,
 _ROW_B2, _ROW_LN2W, _ROW_LN2B) = range(7)


def _layernorm(x, w, b):
    # x: (T, C) f32; w, b: (1, C). Biased variance, eps=1e-6 (PyTorch LN).
    mean = jnp.mean(x, axis=-1, keepdims=True)
    xc = x - mean
    var = jnp.mean(xc * xc, axis=-1, keepdims=True)
    return xc * lax.rsqrt(var + EPS) * w + b


def _gelu_exact(x):
    # nn.GELU default (approximate='none'): 0.5*x*(1+erf(x/sqrt(2)))
    return 0.5 * x * (1.0 + lax.erf(x * 0.7071067811865476))


def blocks_kernel(x_ref, wqkv_ref, wproj_ref, w1_ref, w2_ref, pvec_ref, o_ref,
                  *, num_blocks, matmul_dtype, approx_recip):
    md = matmul_dtype
    # Residual stream stays f32 for the whole chain of fused blocks.
    x = x_ref[...].astype(jnp.float32)                       # (T, C)

    for l in range(num_blocks):          # static unroll over fused blocks
        pv = pvec_ref[l]                 # (8, 128) f32 packed 1-D params
        bo = pv[_ROW_BPROJ:_ROW_BPROJ + 1, :C]               # (1, C)
        ln1w = pv[_ROW_LN1W:_ROW_LN1W + 1, :C]
        ln1b = pv[_ROW_LN1B:_ROW_LN1B + 1, :C]
        b1 = pv[_ROW_B1:_ROW_B1 + 1, :HID]                   # (1, HID)
        b2 = pv[_ROW_B2:_ROW_B2 + 1, :C]
        ln2w = pv[_ROW_LN2W:_ROW_LN2W + 1, :C]
        ln2b = pv[_ROW_LN2B:_ROW_LN2B + 1, :C]

        # ---------------- Attention (Global mixer) ----------------
        xm = x.astype(md)
        # One lane-dense (T, 3C) MXU push; columns are ordered per head as
        # [q_h | k_h | v_h] so each head reads one contiguous 48-lane group.
        qkv = jnp.dot(xm, wqkv_ref[l], preferred_element_type=jnp.float32)
        wproj = wproj_ref[l]                                  # (C, C), md

        attn_proj = jnp.zeros((T, C), jnp.float32)
        for h in range(NUM_HEADS):       # static 2-iteration head loop
            base = h * 3 * HEAD_DIM
            qh = qkv[:, base:base + HEAD_DIM] * SCALE
            kh = qkv[:, base + HEAD_DIM:base + 2 * HEAD_DIM]
            vh = qkv[:, base + 2 * HEAD_DIM:base + 3 * HEAD_DIM]

            # Leading-dim reshapes only (lane dim unchanged) — layout free.
            q3 = qh.reshape(B, N, HEAD_DIM)
            k3 = kh.reshape(B, N, HEAD_DIM)
            v3 = vh.reshape(B, N, HEAD_DIM)

            s = jnp.einsum('bqd,bkd->bqk', q3, k3,
                           preferred_element_type=jnp.float32)   # (B,N,N)
            m = jnp.max(s, axis=-1, keepdims=True)
            e = jnp.exp(s - m)
            den = jnp.sum(e, axis=-1, keepdims=True)
            if approx_recip:
                p = e * pl.reciprocal(den, approx=True)   # EUP vrcp, free slot
            else:
                p = e / den
            oh = jnp.einsum('bqk,bkd->bqd', p, v3,
                            preferred_element_type=jnp.float32)  # (B,N,D)

            # Per-head projection accumulated directly into (T, C): the head's
            # 16 rows of the proj weight (static, aligned sublane slice).
            attn_proj = attn_proj + jnp.dot(
                oh.reshape(T, HEAD_DIM).astype(md),
                wproj[h * HEAD_DIM:(h + 1) * HEAD_DIM, :],
                preferred_element_type=jnp.float32)
        attn_proj = attn_proj + bo

        # residual + norm1   (prenorm=True path)
        x1 = _layernorm(x + attn_proj, ln1w, ln1b)

        # ---------------- MLP ----------------
        h1 = jnp.dot(x1.astype(md), w1_ref[l],
                     preferred_element_type=jnp.float32) + b1
        h1 = _gelu_exact(h1)
        h2 = jnp.dot(h1.astype(md), w2_ref[l],
                     preferred_element_type=jnp.float32) + b2

        # residual + norm2 -> next block's residual stream (stays in VMEM).
        x = _layernorm(x1 + h2, ln2w, ln2b)

    o_ref[...] = x.astype(o_ref.dtype)


def _prepare_block_params(params, matmul_dtype):
    """Wrapper-side layout plumbing for one block (outside the kernel)."""
    (wqkv, wproj, bproj, ln1w, ln1b, w1, b1, w2, b2, ln2w, ln2b) = params

    # PyTorch qkv column order is [q|k|v] x [head] x [head_dim]; reorder to
    # per-head-contiguous [q_h|k_h|v_h] so the kernel's single fused matmul
    # output can be split per head with contiguous 16-lane slices.
    wqkv_r = wqkv.reshape(C, 3, NUM_HEADS, HEAD_DIM)
    wqkv_f = jnp.transpose(wqkv_r, (0, 2, 1, 3)).reshape(C, 3 * C)

    # Pack the seven 1-D parameter vectors into one (8, 128) f32 page.
    pvec = jnp.zeros((8, 128), jnp.float32)
    pvec = pvec.at[_ROW_BPROJ, :C].set(bproj)
    pvec = pvec.at[_ROW_LN1W, :C].set(ln1w)
    pvec = pvec.at[_ROW_LN1B, :C].set(ln1b)
    pvec = pvec.at[_ROW_B1, :HID].set(b1)
    pvec = pvec.at[_ROW_B2, :C].set(b2)
    pvec = pvec.at[_ROW_LN2W, :C].set(ln2w)
    pvec = pvec.at[_ROW_LN2B, :C].set(ln2b)

    return (wqkv_f.astype(matmul_dtype), wproj.astype(matmul_dtype),
            w1.astype(matmul_dtype), w2.astype(matmul_dtype), pvec)


def svtr_blocks_forward(x, params_list, *, matmul_dtype=jnp.bfloat16,
                        approx_recip=True):
    """Run `len(params_list)` consecutive SVTR Blocks in ONE pallas_call.

    bf16 matmul operands are native on the MXU of v5e / v6e / v7x and are the
    default; accumulation, LayerNorm, softmax and the residual stream stay f32
    (`preferred_element_type=jnp.float32`). Pass matmul_dtype=jnp.float32 and
    approx_recip=False for strict-accuracy verification.
    """
    L = len(params_list)
    prepped = [_prepare_block_params(p, matmul_dtype) for p in params_list]
    wqkv_s = jnp.stack([p[0] for p in prepped], 0)    # (L, C, 3C)
    wproj_s = jnp.stack([p[1] for p in prepped], 0)   # (L, C, C)
    w1_s = jnp.stack([p[2] for p in prepped], 0)      # (L, C, HID)
    w2_s = jnp.stack([p[3] for p in prepped], 0)      # (L, HID, C)
    pvec_s = jnp.stack([p[4] for p in prepped], 0)    # (L, 8, 128) f32

    # Flatten tokens (pure row-major reshape); residual stream enters in f32.
    x2 = x.reshape(T, C).astype(jnp.float32)

    args = (x2, wqkv_s, wproj_s, w1_s, w2_s, pvec_s)

    # Advisory cost estimate: this kernel is tiny — tell XLA so.
    flops_per_block = (2 * T * C * 3 * C                            # qkv
                       + 2 * (2 * B * NUM_HEADS * N * N * HEAD_DIM)  # s, p@v
                       + 2 * T * C * C                               # proj
                       + 2 * T * C * HID * 2)                        # fc1+fc2
    transc_per_block = B * NUM_HEADS * N * N + T * HID + 2 * T
    bytes_accessed = sum(int(a.size) * a.dtype.itemsize for a in args) \
        + T * C * 4

    kernel = functools.partial(blocks_kernel, num_blocks=L,
                               matmul_dtype=matmul_dtype,
                               approx_recip=approx_recip)

    # Single gridless invocation: all blocks' weights + activations fit VMEM
    # with huge margin on every TPU generation (incl. v7x's 64 MiB).
    out2 = pl.pallas_call(
        kernel,
        out_shape=jax.ShapeDtypeStruct((T, C), jnp.float32),
        cost_estimate=pl.CostEstimate(flops=L * flops_per_block,
                                      transcendentals=L * transc_per_block,
                                      bytes_accessed=bytes_accessed),
    )(*args)
    return out2.reshape(B, N, C)


def svtr_block_forward(x, params, **kw):
    """Single SVTR Block forward (the original module's semantics)."""
    return svtr_blocks_forward(x, [params], **kw)


# ---------------------------------------------------------------------------
# Pure-JAX reference (mirrors the PyTorch Block in eval mode).
# ---------------------------------------------------------------------------
def reference_forward(x, params):
    (wqkv, wproj, bproj, ln1w, ln1b, w1, b1, w2, b2, ln2w, ln2b) = params
    x = x.astype(jnp.float32)

    def ln(v, w, b):
        mu = jnp.mean(v, -1, keepdims=True)
        var = jnp.mean((v - mu) ** 2, -1, keepdims=True)
        return (v - mu) / jnp.sqrt(var + EPS) * w + b

    qkv = x @ wqkv                                   # (B, N, 3C)
    qkv = qkv.reshape(B, N, 3, NUM_HEADS, HEAD_DIM).transpose(2, 0, 3, 1, 4)
    q, k, v = qkv[0] * SCALE, qkv[1], qkv[2]
    attn = jax.nn.softmax(q @ k.transpose(0, 1, 3, 2), axis=-1)
    ao = (attn @ v).transpose(0, 2, 1, 3).reshape(B, N, C)
    ao = ao @ wproj + bproj
    x1 = ln(x + ao, ln1w, ln1b)
    h = jax.nn.gelu(x1 @ w1 + b1, approximate=False)
    h = h @ w2 + b2
    return ln(x1 + h, ln2w, ln2b)


def make_params(key):
    ks = jax.random.split(key, 11)
    wqkv = 0.05 * jax.random.normal(ks[0], (C, 3 * C), dtype=jnp.float32)
    wproj = 0.05 * jax.random.normal(ks[1], (C, C), dtype=jnp.float32)
    bproj = 0.05 * jax.random.normal(ks[2], (C,), dtype=jnp.float32)
    ln1w = 1.0 + 0.01 * jax.random.normal(ks[3], (C,), dtype=jnp.float32)
    ln1b = 0.01 * jax.random.normal(ks[4], (C,), dtype=jnp.float32)
    w1 = 0.05 * jax.random.normal(ks[5], (C, HID), dtype=jnp.float32)
    b1 = 0.05 * jax.random.normal(ks[6], (HID,), dtype=jnp.float32)
    w2 = 0.05 * jax.random.normal(ks[7], (HID, C), dtype=jnp.float32)
    b2 = 0.05 * jax.random.normal(ks[8], (C,), dtype=jnp.float32)
    ln2w = 1.0 + 0.01 * jax.random.normal(ks[9], (C,), dtype=jnp.float32)
    ln2b = 0.01 * jax.random.normal(ks[10], (C,), dtype=jnp.float32)
    return (wqkv, wproj, bproj, ln1w, ln1b, w1, b1, w2, b2, ln2w, ln2b)


if __name__ == "__main__":
    key = jax.random.PRNGKey(0)
    kx, kp0, kp1, kp2 = jax.random.split(key, 4)

    x = jax.random.normal(kx, (B, N, C), dtype=jnp.float32)
    params0 = make_params(kp0)
    params1 = make_params(kp1)
    params2 = make_params(kp2)

    ref = reference_forward(x, params0)

    # 1) Strict-accuracy configuration (f32 matmuls, exact reciprocal):
    #    verifies the restructured kernel (fused qkv matmul, packed 1-D param
    #    slab, f32 residual stream) is numerically equivalent to the module.
    out_f32 = svtr_block_forward(x, params0, matmul_dtype=jnp.float32,
                                 approx_recip=False)
    out_f32 = jax.block_until_ready(out_f32)
    assert out_f32.shape == (B, N, C)
    assert jnp.allclose(out_f32, ref, atol=1e-4, rtol=1e-4), (
        float(jnp.max(jnp.abs(out_f32 - ref))))

    # 2) Performance configuration (defaults: bf16 matmul operands + EUP
    #    approximate reciprocal). Agreement is bf16-level -> looser tolerance.
    out_perf = svtr_block_forward(x, params0)
    out_perf = jax.block_until_ready(out_perf)
    assert out_perf.shape == (B, N, C)
    assert jnp.allclose(out_perf, ref, atol=5e-2, rtol=5e-2), (
        float(jnp.max(jnp.abs(out_perf - ref))))

    # 3) Amortization path: three consecutive Blocks fused into ONE kernel
    #    invocation (intermediates stay in VMEM), strict config, checked
    #    against applying the reference block three times.
    ref_chain = x
    for p in (params0, params1, params2):
        ref_chain = reference_forward(ref_chain, p)
    out_chain = svtr_blocks_forward(x, [params0, params1, params2],
                                    matmul_dtype=jnp.float32,
                                    approx_recip=False)
    out_chain = jax.block_until_ready(out_chain)
    assert out_chain.shape == (B, N, C)
    assert jnp.allclose(out_chain, ref_chain, atol=1e-3, rtol=1e-3), (
        float(jnp.max(jnp.abs(out_chain - ref_chain))))

    print("KERNEL_OK")
</pallas_src>

<mosaic_0001>
module attributes {stable_mosaic.version = 11 : i64} {
  func.func @blocks_kernel(%arg0: memref<64x32xf32, #tpu.memory_space<vmem>>, %arg1: memref<1x32x96xf32, #tpu.memory_space<vmem>>, %arg2: memref<1x32x32xf32, #tpu.memory_space<vmem>>, %arg3: memref<1x32x128xf32, #tpu.memory_space<vmem>>, %arg4: memref<1x128x32xf32, #tpu.memory_space<vmem>>, %arg5: memref<1x8x128xf32, #tpu.memory_space<vmem>>, %arg6: memref<64x32xf32, #tpu.memory_space<vmem>>) attributes {dimension_semantics = [], scalar_prefetch = 0 : i64, scratch_operands = 0 : i64, tpu.core_type = #tpu.core_type<tc>} {
    %c0 = arith.constant 0 : index
    %c0_0 = arith.constant 0 : index
    %0 = vector.load %arg0[%c0, %c0_0] : memref<64x32xf32, #tpu.memory_space<vmem>>, vector<64x32xf32>
    %c0_1 = arith.constant 0 : index
    %c0_2 = arith.constant 0 : index
    %c0_3 = arith.constant 0 : index
    %1 = vector.load %arg5[%c0_1, %c0_2, %c0_3] : memref<1x8x128xf32, #tpu.memory_space<vmem>>, vector<1x8x128xf32>
    %2 = vector.shape_cast %1 : vector<1x8x128xf32> to vector<8x128xf32>
    %3 = vector.extract_strided_slice %2 {offsets = [0, 0], sizes = [1, 32], strides = [1, 1]} : vector<8x128xf32> to vector<1x32xf32>
    %4 = vector.extract_strided_slice %2 {offsets = [1, 0], sizes = [1, 32], strides = [1, 1]} : vector<8x128xf32> to vector<1x32xf32>
    %5 = vector.extract_strided_slice %2 {offsets = [2, 0], sizes = [1, 32], strides = [1, 1]} : vector<8x128xf32> to vector<1x32xf32>
    %6 = vector.extract_strided_slice %2 {offsets = [3, 0], sizes = [1, 128], strides = [1, 1]} : vector<8x128xf32> to vector<1x128xf32>
    %7 = vector.extract_strided_slice %2 {offsets = [4, 0], sizes = [1, 32], strides = [1, 1]} : vector<8x128xf32> to vector<1x32xf32>
    %8 = vector.extract_strided_slice %2 {offsets = [5, 0], sizes = [1, 32], strides = [1, 1]} : vector<8x128xf32> to vector<1x32xf32>
    %9 = vector.extract_strided_slice %2 {offsets = [6, 0], sizes = [1, 32], strides = [1, 1]} : vector<8x128xf32> to vector<1x32xf32>
    %c0_4 = arith.constant 0 : index
    %c0_5 = arith.constant 0 : index
    %c0_6 = arith.constant 0 : index
    %10 = vector.load %arg1[%c0_4, %c0_5, %c0_6] : memref<1x32x96xf32, #tpu.memory_space<vmem>>, vector<1x32x96xf32>
    %11 = vector.shape_cast %10 : vector<1x32x96xf32> to vector<32x96xf32>
    %cst = arith.constant dense<0.000000e+00> : vector<64x96xf32>
    %12 = tpu.matmul %0, %11, %cst {dimension_numbers = #tpu.dot_dimension_numbers<[1], [0], [0], [1], [0, 0, 1, 1], [], []>} : vector<64x32xf32>, vector<32x96xf32>, vector<64x96xf32> -> vector<64x96xf32>
    %c0_7 = arith.constant 0 : index
    %c0_8 = arith.constant 0 : index
    %c0_9 = arith.constant 0 : index
    %13 = vector.load %arg2[%c0_7, %c0_8, %c0_9] : memref<1x32x32xf32, #tpu.memory_space<vmem>>, vector<1x32x32xf32>
    %14 = vector.shape_cast %13 : vector<1x32x32xf32> to vector<32x32xf32>
    %cst_10 = arith.constant 0.000000e+00 : f32
    %15 = vector.broadcast %cst_10 : f32 to vector<64x32xf32>
    %16 = vector.extract_strided_slice %12 {offsets = [0, 0], sizes = [64, 16], strides = [1, 1]} : vector<64x96xf32> to vector<64x16xf32>
    %cst_11 = arith.constant 2.500000e-01 : f32
    %17 = vector.broadcast %cst_11 : f32 to vector<64x16xf32>
    %18 = arith.mulf %16, %17 : vector<64x16xf32>
    %19 = vector.extract_strided_slice %12 {offsets = [0, 16], sizes = [64, 16], strides = [1, 1]} : vector<64x96xf32> to vector<64x16xf32>
    %20 = vector.extract_strided_slice %12 {offsets = [0, 32], sizes = [64, 16], strides = [1, 1]} : vector<64x96xf32> to vector<64x16xf32>
    %21 = vector.shape_cast %18 : vector<64x16xf32> to vector<2x32x16xf32>
    %22 = vector.shape_cast %19 : vector<64x16xf32> to vector<2x32x16xf32>
    %23 = vector.shape_cast %20 : vector<64x16xf32> to vector<2x32x16xf32>
    "tpu.trace_start"() <{level = 10 : i32, message = "bqd,bkd->bqk"}> : () -> ()
    %cst_12 = arith.constant dense<0.000000e+00> : vector<2x32x32xf32>
    %24 = tpu.matmul %21, %22, %cst_12 {dimension_numbers = #tpu.dot_dimension_numbers<[2], [2], [1], [1], [0, 0, 0, 1, 1, 1], [0], [0]>} : vector<2x32x16xf32>, vector<2x32x16xf32>, vector<2x32x32xf32> -> vector<2x32x32xf32>
    "tpu.trace_stop"() : () -> ()
    %cst_13 = arith.constant dense<0xFF800000> : vector<2x32xf32>
    %25 = vector.multi_reduction <maximumf>, %24, %cst_13 [2] : vector<2x32x32xf32> to vector<2x32xf32>
    %26 = vector.shape_cast %25 : vector<2x32xf32> to vector<2x32x1xf32>
    %27 = vector.broadcast %26 : vector<2x32x1xf32> to vector<2x32x32xf32>
    %28 = arith.subf %24, %27 : vector<2x32x32xf32>
    %29 = math.exp %28 : vector<2x32x32xf32>
    %cst_14 = arith.constant dense<0.000000e+00> : vector<2x32xf32>
    %30 = vector.multi_reduction <add>, %29, %cst_14 [2] : vector<2x32x32xf32> to vector<2x32xf32>
    %31 = vector.shape_cast %30 : vector<2x32xf32> to vector<2x32x1xf32>
    %32 = vector.broadcast %31 : vector<2x32x1xf32> to vector<2x32x32xf32>
    %33 = arith.divf %29, %32 : vector<2x32x32xf32>
    "tpu.trace_start"() <{level = 10 : i32, message = "bqk,bkd->bqd"}> : () -> ()
    %cst_15 = arith.constant dense<0.000000e+00> : vector<2x32x16xf32>
    %34 = tpu.matmul %33, %23, %cst_15 {dimension_numbers = #tpu.dot_dimension_numbers<[2], [1], [1], [2], [0, 0, 0, 1, 1, 2], [0], [0]>} : vector<2x32x32xf32>, vector<2x32x16xf32>, vector<2x32x16xf32> -> vector<2x32x16xf32>
    "tpu.trace_stop"() : () -> ()
    %35 = vector.shape_cast %34 : vector<2x32x16xf32> to vector<64x16xf32>
    %36 = vector.extract_strided_slice %14 {offsets = [0, 0], sizes = [16, 32], strides = [1, 1]} : vector<32x32xf32> to vector<16x32xf32>
    %cst_16 = arith.constant dense<0.000000e+00> : vector<64x32xf32>
    %37 = tpu.matmul %35, %36, %cst_16 {dimension_numbers = #tpu.dot_dimension_numbers<[1], [0], [0], [1], [0, 0, 1, 1], [], []>} : vector<64x16xf32>, vector<16x32xf32>, vector<64x32xf32> -> vector<64x32xf32>
    %38 = arith.addf %15, %37 : vector<64x32xf32>
    %39 = vector.extract_strided_slice %12 {offsets = [0, 48], sizes = [64, 16], strides = [1, 1]} : vector<64x96xf32> to vector<64x16xf32>
    %cst_17 = arith.constant 2.500000e-01 : f32
    %40 = vector.broadcast %cst_17 : f32 to vector<64x16xf32>
    %41 = arith.mulf %39, %40 : vector<64x16xf32>
    %42 = vector.extract_strided_slice %12 {offsets = [0, 64], sizes = [64, 16], strides = [1, 1]} : vector<64x96xf32> to vector<64x16xf32>
    %43 = vector.extract_strided_slice %12 {offsets = [0, 80], sizes = [64, 16], strides = [1, 1]} : vector<64x96xf32> to vector<64x16xf32>
    %44 = vector.shape_cast %41 : vector<64x16xf32> to vector<2x32x16xf32>
    %45 = vector.shape_cast %42 : vector<64x16xf32> to vector<2x32x16xf32>
    %46 = vector.shape_cast %43 : vector<64x16xf32> to vector<2x32x16xf32>
    "tpu.trace_start"() <{level = 10 : i32, message = "bqd,bkd->bqk"}> : () -> ()
    %cst_18 = arith.constant dense<0.000000e+00> : vector<2x32x32xf32>
    %47 = tpu.matmul %44, %45, %cst_18 {dimension_numbers = #tpu.dot_dimension_numbers<[2], [2], [1], [1], [0, 0, 0, 1, 1, 1], [0], [0]>} : vector<2x32x16xf32>, vector<2x32x16xf32>, vector<2x32x32xf32> -> vector<2x32x32xf32>
    "tpu.trace_stop"() : () -> ()
    %cst_19 = arith.constant dense<0xFF800000> : vector<2x32xf32>
    %48 = vector.multi_reduction <maximumf>, %47, %cst_19 [2] : vector<2x32x32xf32> to vector<2x32xf32>
    %49 = vector.shape_cast %48 : vector<2x32xf32> to vector<2x32x1xf32>
    %50 = vector.broadcast %49 : vector<2x32x1xf32> to vector<2x32x32xf32>
    %51 = arith.subf %47, %50 : vector<2x32x32xf32>
    %52 = math.exp %51 : vector<2x32x32xf32>
    %cst_20 = arith.constant dense<0.000000e+00> : vector<2x32xf32>
    %53 = vector.multi_reduction <add>, %52, %cst_20 [2] : vector<2x32x32xf32> to vector<2x32xf32>
    %54 = vector.shape_cast %53 : vector<2x32xf32> to vector<2x32x1xf32>
    %55 = vector.broadcast %54 : vector<2x32x1xf32> to vector<2x32x32xf32>
    %56 = arith.divf %52, %55 : vector<2x32x32xf32>
    "tpu.trace_start"() <{level = 10 : i32, message = "bqk,bkd->bqd"}> : () -> ()
    %cst_21 = arith.constant dense<0.000000e+00> : vector<2x32x16xf32>
    %57 = tpu.matmul %56, %46, %cst_21 {dimension_numbers = #tpu.dot_dimension_numbers<[2], [1], [1], [2], [0, 0, 0, 1, 1, 2], [0], [0]>} : vector<2x32x32xf32>, vector<2x32x16xf32>, vector<2x32x16xf32> -> vector<2x32x16xf32>
    "tpu.trace_stop"() : () -> ()
    %58 = vector.shape_cast %57 : vector<2x32x16xf32> to vector<64x16xf32>
    %59 = vector.extract_strided_slice %14 {offsets = [16, 0], sizes = [16, 32], strides = [1, 1]} : vector<32x32xf32> to vector<16x32xf32>
    %cst_22 = arith.constant dense<0.000000e+00> : vector<64x32xf32>
    %60 = tpu.matmul %58, %59, %cst_22 {dimension_numbers = #tpu.dot_dimension_numbers<[1], [0], [0], [1], [0, 0, 1, 1], [], []>} : vector<64x16xf32>, vector<16x32xf32>, vector<64x32xf32> -> vector<64x32xf32>
    %61 = arith.addf %38, %60 : vector<64x32xf32>
    %62 = vector.broadcast %3 : vector<1x32xf32> to vector<64x32xf32>
    %63 = arith.addf %61, %62 : vector<64x32xf32>
    %64 = arith.addf %0, %63 : vector<64x32xf32>
    %cst_23 = arith.constant dense<0.000000e+00> : vector<64xf32>
    %65 = vector.multi_reduction <add>, %64, %cst_23 [1] : vector<64x32xf32> to vector<64xf32>
    %66 = vector.shape_cast %65 : vector<64xf32> to vector<64x1xf32>
    %cst_24 = arith.constant 3.200000e+01 : f32
    %67 = vector.broadcast %cst_24 : f32 to vector<64x1xf32>
    %68 = arith.divf %66, %67 : vector<64x1xf32>
    %69 = vector.broadcast %68 : vector<64x1xf32> to vector<64x32xf32>
    %70 = arith.subf %64, %69 : vector<64x32xf32>
    %71 = arith.mulf %70, %70 : vector<64x32xf32>
    %cst_25 = arith.constant dense<0.000000e+00> : vector<64xf32>
    %72 = vector.multi_reduction <add>, %71, %cst_25 [1] : vector<64x32xf32> to vector<64xf32>
    %73 = vector.shape_cast %72 : vector<64xf32> to vector<64x1xf32>
    %cst_26 = arith.constant 3.200000e+01 : f32
    %74 = vector.broadcast %cst_26 : f32 to vector<64x1xf32>
    %75 = arith.divf %73, %74 : vector<64x1xf32>
    %cst_27 = arith.constant 9.99999997E-7 : f32
    %76 = vector.broadcast %cst_27 : f32 to vector<64x1xf32>
    %77 = arith.addf %75, %76 : vector<64x1xf32>
    %78 = math.rsqrt %77 : vector<64x1xf32>
    %79 = vector.broadcast %78 : vector<64x1xf32> to vector<64x32xf32>
    %80 = arith.mulf %70, %79 : vector<64x32xf32>
    %81 = vector.broadcast %4 : vector<1x32xf32> to vector<64x32xf32>
    %82 = arith.mulf %80, %81 : vector<64x32xf32>
    %83 = vector.broadcast %5 : vector<1x32xf32> to vector<64x32xf32>
    %84 = arith.addf %82, %83 : vector<64x32xf32>
    %c0_28 = arith.constant 0 : index
    %c0_29 = arith.constant 0 : index
    %c0_30 = arith.constant 0 : index
    %85 = vector.load %arg3[%c0_28, %c0_29, %c0_30] : memref<1x32x128xf32, #tpu.memory_space<vmem>>, vector<1x32x128xf32>
    %86 = vector.shape_cast %85 : vector<1x32x128xf32> to vector<32x128xf32>
    %cst_31 = arith.constant dense<0.000000e+00> : vector<64x128xf32>
    %87 = tpu.matmul %84, %86, %cst_31 {dimension_numbers = #tpu.dot_dimension_numbers<[1], [0], [0], [1], [0, 0, 1, 1], [], []>} : vector<64x32xf32>, vector<32x128xf32>, vector<64x128xf32> -> vector<64x128xf32>
    %88 = vector.broadcast %6 : vector<1x128xf32> to vector<64x128xf32>
    %89 = arith.addf %87, %88 : vector<64x128xf32>
    %cst_32 = arith.constant 5.000000e-01 : f32
    %90 = vector.broadcast %cst_32 : f32 to vector<64x128xf32>
    %91 = arith.mulf %90, %89 : vector<64x128xf32>
    %cst_33 = arith.constant 0.707106769 : f32
    %92 = vector.broadcast %cst_33 : f32 to vector<64x128xf32>
    %93 = arith.mulf %89, %92 : vector<64x128xf32>
    %94 = math.erf %93 : vector<64x128xf32>
    %cst_34 = arith.constant 1.000000e+00 : f32
    %95 = vector.broadcast %cst_34 : f32 to vector<64x128xf32>
    %96 = arith.addf %95, %94 : vector<64x128xf32>
    %97 = arith.mulf %91, %96 : vector<64x128xf32>
    %c0_35 = arith.constant 0 : index
    %c0_36 = arith.constant 0 : index
    %c0_37 = arith.constant 0 : index
    %98 = vector.load %arg4[%c0_35, %c0_36, %c0_37] : memref<1x128x32xf32, #tpu.memory_space<vmem>>, vector<1x128x32xf32>
    %99 = vector.shape_cast %98 : vector<1x128x32xf32> to vector<128x32xf32>
    %cst_38 = arith.constant dense<0.000000e+00> : vector<64x32xf32>
    %100 = tpu.matmul %97, %99, %cst_38 {dimension_numbers = #tpu.dot_dimension_numbers<[1], [0], [0], [1], [0, 0, 1, 1], [], []>} : vector<64x128xf32>, vector<128x32xf32>, vector<64x32xf32> -> vector<64x32xf32>
    %101 = vector.broadcast %7 : vector<1x32xf32> to vector<64x32xf32>
    %102 = arith.addf %100, %101 : vector<64x32xf32>
    %103 = arith.addf %84, %102 : vector<64x32xf32>
    %cst_39 = arith.constant dense<0.000000e+00> : vector<64xf32>
    %104 = vector.multi_reduction <add>, %103, %cst_39 [1] : vector<64x32xf32> to vector<64xf32>
    %105 = vector.shape_cast %104 : vector<64xf32> to vector<64x1xf32>
    %cst_40 = arith.constant 3.200000e+01 : f32
    %106 = vector.broadcast %cst_40 : f32 to vector<64x1xf32>
    %107 = arith.divf %105, %106 : vector<64x1xf32>
    %108 = vector.broadcast %107 : vector<64x1xf32> to vector<64x32xf32>
    %109 = arith.subf %103, %108 : vector<64x32xf32>
    %110 = arith.mulf %109, %109 : vector<64x32xf32>
    %cst_41 = arith.constant dense<0.000000e+00> : vector<64xf32>
    %111 = vector.multi_reduction <add>, %110, %cst_41 [1] : vector<64x32xf32> to vector<64xf32>
    %112 = vector.shape_cast %111 : vector<64xf32> to vector<64x1xf32>
    %cst_42 = arith.constant 3.200000e+01 : f32
    %113 = vector.broadcast %cst_42 : f32 to vector<64x1xf32>
    %114 = arith.divf %112, %113 : vector<64x1xf32>
    %cst_43 = arith.constant 9.99999997E-7 : f32
    %115 = vector.broadcast %cst_43 : f32 to vector<64x1xf32>
    %116 = arith.addf %114, %115 : vector<64x1xf32>
    %117 = math.rsqrt %116 : vector<64x1xf32>
    %118 = vector.broadcast %117 : vector<64x1xf32> to vector<64x32xf32>
    %119 = arith.mulf %109, %118 : vector<64x32xf32>
    %120 = vector.broadcast %8 : vector<1x32xf32> to vector<64x32xf32>
    %121 = arith.mulf %119, %120 : vector<64x32xf32>
    %122 = vector.broadcast %9 : vector<1x32xf32> to vector<64x32xf32>
    %123 = arith.addf %121, %122 : vector<64x32xf32>
    %c0_44 = arith.constant 0 : index
    %c0_45 = arith.constant 0 : index
    %124 = vector.load %arg6[%c0_44, %c0_45] : memref<64x32xf32, #tpu.memory_space<vmem>>, vector<64x32xf32>
    tpu.vector_store %arg6[%c0_44, %c0_45], %123 {strides = array<i32>} : memref<64x32xf32, #tpu.memory_space<vmem>>, vector<64x32xf32>,
    return
  }
}

</mosaic_0001>

<llo_original>
// kernel: tpu_custom_call.1
$region0: #{tpu_custom_call.1}
  #allocation0 [shape = 'u32[]', space=smem, size = 0x4, offset = 0x4, fixed_abs, tag = 'smem constant byte address 0x4 - core index']
  #allocation1 [shape = 'u32[144,128]{1,0:T(1,128)}', space=vmem, size = 0x12000, scoped, tag = 'internal scratch']
  %s0 = inlined_call_operand.vmem [shape: f32[64,32], index: 0, kind: input, shape index: {}]
  %s1 = inlined_call_operand.vmem [shape: f32[1,32,96], index: 1, kind: input, shape index: {}]
  %s2 = inlined_call_operand.vmem [shape: f32[1,32,32], index: 2, kind: input, shape index: {}]
  %s3 = inlined_call_operand.vmem [shape: f32[1,32,128], index: 3, kind: input, shape index: {}]
  %s4 = inlined_call_operand.vmem [shape: f32[1,128,32], index: 4, kind: input, shape index: {}]
  %s5 = inlined_call_operand.vmem [shape: f32[1,8,128], index: 5, kind: input, shape index: {}]
  %s6 = inlined_call_operand.vmem [shape: f32[64,32], index: 6, kind: output, shape index: {}]
  %s7 = sld [smem:[#allocation0]]
  $region34: #{tpu_custom_call.1} parent=0
    _
  %s9 = ssub.s32 1, %s7
  %s10 = scalar_select 0, %s9, %s7
  // Predicated region
  $region2: #{tpu_custom_call.1} parent=0 // pred_check
    _
  $region3: #{tpu_custom_call.1} parent=0 // pred_check_branch
    %12 = sbr.rel (0) target = $region5
  $region4: #{tpu_custom_call.1} parent=0 // pred_region
    _
  $region5: #{tpu_custom_call.1} parent=0 // pred_fallthru
    _
  // Predicated region
  $region6: #{tpu_custom_call.1} parent=0 // pred_check
    _
  $region7: #{tpu_custom_call.1} parent=0 // pred_check_branch
    %14 = sbr.rel (0) target = $region9
  $region8: #{tpu_custom_call.1} parent=0 // pred_region
    _
  $region9: #{tpu_custom_call.1} parent=0 // pred_fallthru
    _
  // Predicated region
  $region10: #{tpu_custom_call.1} parent=0 // pred_check
    _
  $region11: #{tpu_custom_call.1} parent=0 // pred_check_branch
    %16 = sbr.rel (0) target = $region13
  $region12: #{tpu_custom_call.1} parent=0 // pred_region
    _
  $region13: #{tpu_custom_call.1} parent=0 // pred_fallthru
    _
  // Predicated region
  $region14: #{tpu_custom_call.1} parent=0 // pred_check
    _
  $region15: #{tpu_custom_call.1} parent=0 // pred_check_branch
    %18 = sbr.rel (0) target = $region17
  $region16: #{tpu_custom_call.1} parent=0 // pred_region
    _
  $region17: #{tpu_custom_call.1} parent=0 // pred_fallthru
    _
  // Predicated region
  $region18: #{tpu_custom_call.1} parent=0 // pred_check
    _
  $region19: #{tpu_custom_call.1} parent=0 // pred_check_branch
    %20 = sbr.rel (0) target = $region21
  $region20: #{tpu_custom_call.1} parent=0 // pred_region
    _
  $region21: #{tpu_custom_call.1} parent=0 // pred_fallthru
    _
  // Predicated region
  $region22: #{tpu_custom_call.1} parent=0 // pred_check
    _
  $region23: #{tpu_custom_call.1} parent=0 // pred_check_branch
    %22 = sbr.rel (0) target = $region25
  $region24: #{tpu_custom_call.1} parent=0 // pred_region
    _
  $region25: #{tpu_custom_call.1} parent=0 // pred_fallthru
    _
  %v23 = vld [vmem:[%s0] sm:$0xff]
  %v24 = vld [vmem:[%s0 + $0x8] sm:$0xff]
  %v25 = vld [vmem:[%s0 + $0x10] sm:$0xff]
  %v26 = vld [vmem:[%s0 + $0x18] sm:$0xff]
  %v27 = vld [vmem:[%s0 + $0x20] sm:$0xff]
  %v28 = vld [vmem:[%s0 + $0x28] sm:$0xff]
  %v29 = vld [vmem:[%s0 + $0x30] sm:$0xff]
  %v30 = vld [vmem:[%s0 + $0x38] sm:$0xff]
  %v31 = vld [vmem:[%s5] sm:$0xff]
  %v32 = vld [vmem:[%s1] sm:$0xff]
  %v33 = vld [vmem:[%s1 + $0x8] sm:$0xff]
  %v34 = vld [vmem:[%s1 + $0x10] sm:$0xff]
  %v35 = vld [vmem:[%s1 + $0x18] sm:$0xff]
  %vm36 = vcmask 261120
  %v38 = vsel %vm36, %v23, 0
  %v41 = vsel %vm36, %v24, 0
  %v44 = vsel %vm36, %v25, 0
  %v47 = vsel %vm36, %v26, 0
  %v50 = vsel %vm36, %v27, 0
  %v53 = vsel %vm36, %v28, 0
  %v56 = vsel %vm36, %v29, 0
  %v59 = vsel %vm36, %v30, 0
  %61 = vmatprep.subr.mxu0 0.0
  %62 = vmatpush1.msra.mxu0 %v32
  %63 = vmatprep.subr.mxu0 0.0
  %64 = vmatpush1.msra.mxu0 %v33
  %65 = vmatprep.subr.mxu0 0.0
  %66 = vmatpush1.msra.mxu0 %v34
  %67 = vmatprep.subr.mxu0 0.0
  %68 = vmatpush1.msra.mxu0 %v35
  %69 = vmatprep.subr.mxu0 0.0
  %70 = vmatpush1.msra.mxu0 0.0
  %71 = vmatprep.subr.mxu0 0.0
  %72 = vmatpush1.msra.mxu0 0.0
  %73 = vmatprep.subr.mxu0 0.0
  %74 = vmatpush1.msra.mxu0 0.0
  %75 = vmatprep.subr.mxu0 0.0
  %76 = vmatpush1.msra.mxu0 0.0
  %77 = vmatprep.subr.mxu0 0.0
  %78 = vmatpush1.msra.mxu0 0.0
  %79 = vmatprep.subr.mxu0 0.0
  %80 = vmatpush1.msra.mxu0 0.0
  %81 = vmatprep.subr.mxu0 0.0
  %82 = vmatpush1.msra.mxu0 0.0
  %83 = vmatprep.subr.mxu0 0.0
  %84 = vmatpush1.msra.mxu0 0.0
  %85 = vmatprep.subr.mxu0 0.0
  %86 = vmatpush1.msra.mxu0 0.0
  %87 = vmatprep.subr.mxu0 0.0
  %88 = vmatpush1.msra.mxu0 0.0
  %89 = vmatprep.subr.mxu0 0.0
  %90 = vmatpush1.msra.mxu0 0.0
  %91 = vmatprep.subr.mxu0 0.0
  %92 = vmatpush1.msra.mxu0 0.0
  %93 = vmatprep.subr.mxu0 0.0
  %94 = vmatpush1.msra.mxu0 0.0
  %95 = vmatprep.subr.mxu0 0.0
  %96 = vmatpush1.msra.mxu0 0.0
  %97 = vmatprep.subr.mxu0 0.0
  %98 = vmatpush1.msra.mxu0 0.0
  %99 = vmatprep.subr.mxu0 0.0
  %100 = vmatpush1.msra.mxu0 0.0
  %101 = vmatprep.subr.mxu0 0.0
  %102 = vmatpush1.msra.mxu0 0.0
  %103 = vmatprep.subr.mxu0 0.0
  %104 = vmatpush1.msra.mxu0 0.0
  %105 = vmatprep.subr.mxu0 0.0
  %106 = vmatpush1.msra.mxu0 0.0
  %107 = vmatprep.subr.mxu0 0.0
  %108 = vmatpush1.msra.mxu0 0.0
  %109 = vmatprep.subr.mxu0 0.0
  %110 = vmatpush1.msra.mxu0 0.0
  %111 = vmatprep.subr.mxu0 0.0
  %112 = vmatpush1.msra.mxu0 0.0
  %113 = vmatprep.subr.mxu0 0.0
  %114 = vmatpush1.msra.mxu0 0.0
  %115 = vmatprep.subr.mxu0 0.0
  %116 = vmatpush1.msra.mxu0 0.0
  %117 = vmatprep.subr.mxu0 0.0
  %118 = vmatpush1.msra.mxu0 0.0
  %119 = vmatprep.subr.mxu0 0.0
  %120 = vmatpush1.msra.mxu0 0.0
  %121 = vmatprep.subr.mxu0 0.0
  %122 = vmatpush1.msra.mxu0 0.0
  %123 = vmatprep.subr.mxu0 0.0
  %124 = vmatpush1.msra.mxu0 0.0
  %125 = vmatprep.mubr.f32.mxu0 0.0
  %126 = vmatmul.mubr.f32.gmra.mrb[0].mxu0 %v38
  %v127 = vpop.f32.mrb[0].mxu0
  %v128 = vadd.f32 0.0, %v127
  %v129 = vpop.f32.mrb[0].mxu0
  %130 = vmatprep.mubr.f32.mxu0 0.0
  %131 = vmatmul.mubr.f32.gmra.mrb[0].mxu0 %v41
  %v132 = vpop.f32.mrb[0].mxu0
  %v133 = vadd.f32 0.0, %v132
  %v134 = vpop.f32.mrb[0].mxu0
  %135 = vmatprep.mubr.f32.mxu0 0.0
  %136 = vmatmul.mubr.f32.gmra.mrb[0].mxu0 %v44
  %v137 = vpop.f32.mrb[0].mxu0
  %v138 = vadd.f32 0.0, %v137
  %v139 = vpop.f32.mrb[0].mxu0
  %140 = vmatprep.mubr.f32.mxu0 0.0
  %141 = vmatmul.mubr.f32.gmra.mrb[0].mxu0 %v47
  %v142 = vpop.f32.mrb[0].mxu0
  %v143 = vadd.f32 0.0, %v142
  %v144 = vpop.f32.mrb[0].mxu0
  %145 = vmatprep.mubr.f32.mxu0 0.0
  %146 = vmatmul.mubr.f32.gmra.mrb[0].mxu0 %v50
  %v147 = vpop.f32.mrb[0].mxu0
  %v148 = vadd.f32 0.0, %v147
  %v149 = vpop.f32.mrb[0].mxu0
  %150 = vmatprep.mubr.f32.mxu0 0.0
  %151 = vmatmul.mubr.f32.gmra.mrb[0].mxu0 %v53
  %v152 = vpop.f32.mrb[0].mxu0
  %v153 = vadd.f32 0.0, %v152
  %v154 = vpop.f32.mrb[0].mxu0
  %155 = vmatprep.mubr.f32.mxu0 0.0
  %156 = vmatmul.mubr.f32.gmra.mrb[0].mxu0 %v56
  %v157 = vpop.f32.mrb[0].mxu0
  %v158 = vadd.f32 0.0, %v157
  %v159 = vpop.f32.mrb[0].mxu0
  %160 = vmatprep.mubr.f32.mxu0 0.0
  %161 = vmatmul.mubr.f32.gmra.mrb[0].mxu0 %v59
  %v162 = vpop.f32.mrb[0].mxu0
  %v163 = vadd.f32 0.0, %v162
  %v164 = vpop.f32.mrb[0].mxu0
  %165 = vdwg.mxu0
  %v166 = vld [vmem:[%s2] sm:$0xff]
  %v167 = vld [vmem:[%s2 + $0x8] sm:$0xff]
  %v168 = vld [vmem:[%s2 + $0x10] sm:$0xff]
  %v169 = vld [vmem:[%s2 + $0x18] sm:$0xff]
  %v170 = vmul.f32 %v128, 0.25
  %v171 = vmul.f32 %v133, 0.25
  %v172 = vmul.f32 %v138, 0.25
  %v173 = vmul.f32 %v143, 0.25
  %v174 = vmul.f32 %v148, 0.25
  %v175 = vmul.f32 %v153, 0.25
  %v176 = vmul.f32 %v158, 0.25
  %v177 = vmul.f32 %v163, 0.25
  %182 = vrot.lane.b32.xlu0 %v128, 112
  %v183 = vpop.permute.xlu0 %182
  %184 = vrot.lane.b32.xlu0 %v133, 112
  %v185 = vpop.permute.xlu0 %184
  %186 = vrot.lane.b32.xlu0 %v138, 112
  %v187 = vpop.permute.xlu0 %186
  %188 = vrot.lane.b32.xlu0 %v143, 112
  %v189 = vpop.permute.xlu0 %188
  %vm190 = vcmask 130048
  %v192 = vsel %vm190, %v170, 0
  %v195 = vsel %vm190, %v171, 0
  %v198 = vsel %vm190, %v172, 0
  %v201 = vsel %vm190, %v173, 0
  %v203 = vsel %vm190, %v183, 0
  %v205 = vsel %vm190, %v185, 0
  %v207 = vsel %vm190, %v187, 0
  %v209 = vsel %vm190, %v189, 0
  %211 = vmatprep.subr.mxu0 0.0
  %212 = vmatpush1.xpose.msra.mxu0 %v203
  %213 = vmatprep.subr.mxu0 0.0
  %214 = vmatpush1.xpose.msra.mxu0 %v205
  %215 = vmatprep.subr.mxu0 0.0
  %216 = vmatpush1.xpose.msra.mxu0 %v207
  %217 = vmatprep.subr.mxu0 0.0
  %218 = vmatpush1.xpose.msra.mxu0 %v209
  %219 = vmatprep.subr.mxu0 0.0
  %220 = vmatpush1.xpose.msra.mxu0 0.0
  %221 = vmatprep.subr.mxu0 0.0
  %222 = vmatpush1.xpose.msra.mxu0 0.0
  %223 = vmatprep.subr.mxu0 0.0
  %224 = vmatpush1.xpose.msra.mxu0 0.0
  %225 = vmatprep.subr.mxu0 0.0
  %226 = vmatpush1.xpose.msra.mxu0 0.0
  %227 = vmatprep.subr.mxu0 0.0
  %228 = vmatpush1.xpose.msra.mxu0 0.0
  %229 = vmatprep.subr.mxu0 0.0
  %230 = vmatpush1.xpose.msra.mxu0 0.0
  %231 = vmatprep.subr.mxu0 0.0
  %232 = vmatpush1.xpose.msra.mxu0 0.0
  %233 = vmatprep.subr.mxu0 0.0
  %234 = vmatpush1.xpose.msra.mxu0 0.0
  %235 = vmatprep.subr.mxu0 0.0
  %236 = vmatpush1.xpose.msra.mxu0 0.0
  %237 = vmatprep.subr.mxu0 0.0
  %238 = vmatpush1.xpose.msra.mxu0 0.0
  %239 = vmatprep.subr.mxu0 0.0
  %240 = vmatpush1.xpose.msra.mxu0 0.0
  %241 = vmatprep.subr.mxu0 0.0
  %242 = vmatpush1.xpose.msra.mxu0 0.0
  %243 = vmatprep.subr.mxu0 0.0
  %244 = vmatpush1.xpose.msra.mxu0 0.0
  %245 = vmatprep.subr.mxu0 0.0
  %246 = vmatpush1.xpose.msra.mxu0 0.0
  %247 = vmatprep.subr.mxu0 0.0
  %248 = vmatpush1.xpose.msra.mxu0 0.0
  %249 = vmatprep.subr.mxu0 0.0
  %250 = vmatpush1.xpose.msra.mxu0 0.0
  %251 = vmatprep.subr.mxu0 0.0
  %252 = vmatpush1.xpose.msra.mxu0 0.0
  %253 = vmatprep.subr.mxu0 0.0
  %254 = vmatpush1.xpose.msra.mxu0 0.0
  %255 = vmatprep.subr.mxu0 0.0
  %256 = vmatpush1.xpose.msra.mxu0 0.0
  %257 = vmatprep.subr.mxu0 0.0
  %258 = vmatpush1.xpose.msra.mxu0 0.0
  %259 = vmatprep.subr.mxu0 0.0
  %260 = vmatpush1.xpose.msra.mxu0 0.0
  %261 = vmatprep.subr.mxu0 0.0
  %262 = vmatpush1.xpose.msra.mxu0 0.0
  %263 = vmatprep.subr.mxu0 0.0
  %264 = vmatpush1.xpose.msra.mxu0 0.0
  %265 = vmatprep.subr.mxu0 0.0
  %266 = vmatpush1.xpose.msra.mxu0 0.0
  %267 = vmatprep.subr.mxu0 0.0
  %268 = vmatpush1.xpose.msra.mxu0 0.0
  %269 = vmatprep.subr.mxu0 0.0
  %270 = vmatpush1.xpose.msra.mxu0 0.0
  %271 = vmatprep.subr.mxu0 0.0
  %272 = vmatpush1.xpose.msra.mxu0 0.0
  %273 = vmatprep.subr.mxu0 0.0
  %274 = vmatpush1.xpose.msra.mxu0 0.0
  %275 = vmatprep.mubr.f32.mxu0 0.0
  %276 = vmatmul.mubr.f32.gmra.mrb[0].mxu0 %v192
  %v277 = vpop.f32.mrb[0].mxu0
  %v278 = vadd.f32 0.0, %v277
  %v279 = vpop.f32.mrb[0].mxu0
  %280 = vmatprep.mubr.f32.mxu0 0.0
  %281 = vmatmul.mubr.f32.gmra.mrb[0].mxu0 %v195
  %v282 = vpop.f32.mrb[0].mxu0
  %v283 = vadd.f32 0.0, %v282
  %v284 = vpop.f32.mrb[0].mxu0
  %285 = vmatprep.mubr.f32.mxu0 0.0
  %286 = vmatmul.mubr.f32.gmra.mrb[0].mxu0 %v198
  %v287 = vpop.f32.mrb[0].mxu0
  %v288 = vadd.f32 0.0, %v287
  %v289 = vpop.f32.mrb[0].mxu0
  %290 = vmatprep.mubr.f32.mxu0 0.0
  %291 = vmatmul.mubr.f32.gmra.mrb[0].mxu0 %v201
  %v292 = vpop.f32.mrb[0].mxu0
  %v293 = vadd.f32 0.0, %v292
  %v294 = vpop.f32.mrb[0].mxu0
  %295 = vdwg.mxu0
  %300 = vrot.lane.b32.xlu0 %v148, 112
  %v301 = vpop.permute.xlu0 %300
  %302 = vrot.lane.b32.xlu0 %v153, 112
  %v303 = vpop.permute.xlu0 %302
  %304 = vrot.lane.b32.xlu0 %v158, 112
  %v305 = vpop.permute.xlu0 %304
  %306 = vrot.lane.b32.xlu0 %v163, 112
  %v307 = vpop.permute.xlu0 %306
  %v309 = vsel %vm190, %v174, 0
  %v312 = vsel %vm190, %v175, 0
  %v315 = vsel %vm190, %v176, 0
  %v318 = vsel %vm190, %v177, 0
  %v320 = vsel %vm190, %v301, 0
  %v322 = vsel %vm190, %v303, 0
  %v324 = vsel %vm190, %v305, 0
  %v326 = vsel %vm190, %v307, 0
  %328 = vmatprep.subr.mxu0 0.0
  %329 = vmatpush1.xpose.msra.mxu0 %v320
  %330 = vmatprep.subr.mxu0 0.0
  %331 = vmatpush1.xpose.msra.mxu0 %v322
  %332 = vmatprep.subr.mxu0 0.0
  %333 = vmatpush1.xpose.msra.mxu0 %v324
  %334 = vmatprep.subr.mxu0 0.0
  %335 = vmatpush1.xpose.msra.mxu0 %v326
  %336 = vmatprep.subr.mxu0 0.0
  %337 = vmatpush1.xpose.msra.mxu0 0.0
  %338 = vmatprep.subr.mxu0 0.0
  %339 = vmatpush1.xpose.msra.mxu0 0.0
  %340 = vmatprep.subr.mxu0 0.0
  %341 = vmatpush1.xpose.msra.mxu0 0.0
  %342 = vmatprep.subr.mxu0 0.0
  %343 = vmatpush1.xpose.msra.mxu0 0.0
  %344 = vmatprep.subr.mxu0 0.0
  %345 = vmatpush1.xpose.msra.mxu0 0.0
  %346 = vmatprep.subr.mxu0 0.0
  %347 = vmatpush1.xpose.msra.mxu0 0.0
  %348 = vmatprep.subr.mxu0 0.0
  %349 = vmatpush1.xpose.msra.mxu0 0.0
  %350 = vmatprep.subr.mxu0 0.0
  %351 = vmatpush1.xpose.msra.mxu0 0.0
  %352 = vmatprep.subr.mxu0 0.0
  %353 = vmatpush1.xpose.msra.mxu0 0.0
  %354 = vmatprep.subr.mxu0 0.0
  %355 = vmatpush1.xpose.msra.mxu0 0.0
  %356 = vmatprep.subr.mxu0 0.0
  %357 = vmatpush1.xpose.msra.mxu0 0.0
  %358 = vmatprep.subr.mxu0 0.0
  %359 = vmatpush1.xpose.msra.mxu0 0.0
  %360 = vmatprep.subr.mxu0 0.0
  %361 = vmatpush1.xpose.msra.mxu0 0.0
  %362 = vmatprep.subr.mxu0 0.0
  %363 = vmatpush1.xpose.msra.mxu0 0.0
  %364 = vmatprep.subr.mxu0 0.0
  %365 = vmatpush1.xpose.msra.mxu0 0.0
  %366 = vmatprep.subr.mxu0 0.0
  %367 = vmatpush1.xpose.msra.mxu0 0.0
  %368 = vmatprep.subr.mxu0 0.0
  %369 = vmatpush1.xpose.msra.mxu0 0.0
  %370 = vmatprep.subr.mxu0 0.0
  %371 = vmatpush1.xpose.msra.mxu0 0.0
  %372 = vmatprep.subr.mxu0 0.0
  %373 = vmatpush1.xpose.msra.mxu0 0.0
  %374 = vmatprep.subr.mxu0 0.0
  %375 = vmatpush1.xpose.msra.mxu0 0.0
  %376 = vmatprep.subr.mxu0 0.0
  %377 = vmatpush1.xpose.msra.mxu0 0.0
  %378 = vmatprep.subr.mxu0 0.0
  %379 = vmatpush1.xpose.msra.mxu0 0.0
  %380 = vmatprep.subr.mxu0 0.0
  %381 = vmatpush1.xpose.msra.mxu0 0.0
  %382 = vmatprep.subr.mxu0 0.0
  %383 = vmatpush1.xpose.msra.mxu0 0.0
  %384 = vmatprep.subr.mxu0 0.0
  %385 = vmatpush1.xpose.msra.mxu0 0.0
  %386 = vmatprep.subr.mxu0 0.0
  %387 = vmatpush1.xpose.msra.mxu0 0.0
  %388 = vmatprep.subr.mxu0 0.0
  %389 = vmatpush1.xpose.msra.mxu0 0.0
  %390 = vmatprep.subr.mxu0 0.0
  %391 = vmatpush1.xpose.msra.mxu0 0.0
  %392 = vmatprep.mubr.f32.mxu0 0.0
  %393 = vmatmul.mubr.f32.gmra.mrb[0].mxu0 %v309
  %v394 = vpop.f32.mrb[0].mxu0
  %v395 = vadd.f32 0.0, %v394
  %v396 = vpop.f32.mrb[0].mxu0
  %397 = vmatprep.mubr.f32.mxu0 0.0
  %398 = vmatmul.mubr.f32.gmra.mrb[0].mxu0 %v312
  %v399 = vpop.f32.mrb[0].mxu0
  %v400 = vadd.f32 0.0, %v399
  %v401 = vpop.f32.mrb[0].mxu0
  %402 = vmatprep.mubr.f32.mxu0 0.0
  %403 = vmatmul.mubr.f32.gmra.mrb[0].mxu0 %v315
  %v404 = vpop.f32.mrb[0].mxu0
  %v405 = vadd.f32 0.0, %v404
  %v406 = vpop.f32.mrb[0].mxu0
  %407 = vmatprep.mubr.f32.mxu0 0.0
  %408 = vmatmul.mubr.f32.gmra.mrb[0].mxu0 %v318
  %v409 = vpop.f32.mrb[0].mxu0
  %v410 = vadd.f32 0.0, %v409
  %v411 = vpop.f32.mrb[0].mxu0
  %412 = vdwg.mxu0
  %v413 = vsel %vm36, %v278, -inf
  %414 = vmax.xlane.f32.xlu0 %v413
  %v415 = vpop.xlane.xlu0 %414
  %v416 = vsel %vm36, %v283, -inf
  %417 = vmax.xlane.f32.xlu0 %v416
  %v418 = vpop.xlane.xlu0 %417
  %v419 = vsel %vm36, %v288, -inf
  %420 = vmax.xlane.f32.xlu0 %v419
  %v421 = vpop.xlane.xlu0 %420
  %v422 = vsel %vm36, %v293, -inf
  %423 = vmax.xlane.f32.xlu0 %v422
  %v424 = vpop.xlane.xlu0 %423
  %v425 = vsel %vm36, %v395, -inf
  %426 = vmax.xlane.f32.xlu0 %v425
  %v427 = vpop.xlane.xlu0 %426
  %v428 = vsel %vm36, %v400, -inf
  %429 = vmax.xlane.f32.xlu0 %v428
  %v430 = vpop.xlane.xlu0 %429
  %v431 = vsel %vm36, %v405, -inf
  %432 = vmax.xlane.f32.xlu0 %v431
  %v433 = vpop.xlane.xlu0 %432
  %v434 = vsel %vm36, %v410, -inf
  %435 = vmax.xlane.f32.xlu0 %v434
  %v436 = vpop.xlane.xlu0 %435
  %v437 = vsub.f32 %v278, %v415
  %v438 = vsub.f32 %v283, %v418
  %v439 = vsub.f32 %v288, %v421
  %v440 = vsub.f32 %v293, %v424
  %v441 = vsub.f32 %v395, %v427
  %v442 = vsub.f32 %v400, %v430
  %v443 = vsub.f32 %v405, %v433
  %v444 = vsub.f32 %v410, %v436
  %v445 = vmul.f32 %v437, 1.442695
  %v446 = vpow.pop %v445
  %v447 = vmul.f32 %v438, 1.442695
  %v448 = vpow.pop %v447
  %v449 = vmul.f32 %v439, 1.442695
  %v450 = vpow.pop %v449
  %v451 = vmul.f32 %v440, 1.442695
  %v452 = vpow.pop %v451
  %v453 = vmul.f32 %v441, 1.442695
  %v454 = vpow.pop %v453
  %v455 = vmul.f32 %v442, 1.442695
  %v456 = vpow.pop %v455
  %v457 = vmul.f32 %v443, 1.442695
  %v458 = vpow.pop %v457
  %v459 = vmul.f32 %v444, 1.442695
  %v460 = vpow.pop %v459
  %v461 = vsel %vm36, %v446, 0.0
  %462 = vadd.xlane.f32.xlu0 %v461
  %v463 = vpop.xlane.xlu0 %462
  %v464 = vsel %vm36, %v448, 0.0
  %465 = vadd.xlane.f32.xlu0 %v464
  %v466 = vpop.xlane.xlu0 %465
  %v467 = vsel %vm36, %v450, 0.0
  %468 = vadd.xlane.f32.xlu0 %v467
  %v469 = vpop.xlane.xlu0 %468
  %v470 = vsel %vm36, %v452, 0.0
  %471 = vadd.xlane.f32.xlu0 %v470
  %v472 = vpop.xlane.xlu0 %471
  %v473 = vsel %vm36, %v454, 0.0
  %474 = vadd.xlane.f32.xlu0 %v473
  %v475 = vpop.xlane.xlu0 %474
  %v476 = vsel %vm36, %v456, 0.0
  %477 = vadd.xlane.f32.xlu0 %v476
  %v478 = vpop.xlane.xlu0 %477
  %v479 = vsel %vm36, %v458, 0.0
  %480 = vadd.xlane.f32.xlu0 %v479
  %v481 = vpop.xlane.xlu0 %480
  %v482 = vsel %vm36, %v460, 0.0
  %483 = vadd.xlane.f32.xlu0 %v482
  %v484 = vpop.xlane.xlu0 %483
  %v485 = vrcp.pop %v463
  %v486 = vmul.f32 %v446, %v485
  %v487 = vrcp.pop %v466
  %v488 = vmul.f32 %v448, %v487
  %v489 = vrcp.pop %v469
  %v490 = vmul.f32 %v450, %v489
  %v491 = vrcp.pop %v472
  %v492 = vmul.f32 %v452, %v491
  %v493 = vrcp.pop %v475
  %v494 = vmul.f32 %v454, %v493
  %v495 = vrcp.pop %v478
  %v496 = vmul.f32 %v456, %v495
  %v497 = vrcp.pop %v481
  %v498 = vmul.f32 %v458, %v497
  %v499 = vrcp.pop %v484
  %v500 = vmul.f32 %v460, %v499
  %501 = vrot.lane.b32.xlu0 %v128, 96
  %v502 = vpop.permute.xlu0 %501
  %503 = vrot.lane.b32.xlu0 %v133, 96
  %v504 = vpop.permute.xlu0 %503
  %505 = vrot.lane.b32.xlu0 %v138, 96
  %v506 = vpop.permute.xlu0 %505
  %507 = vrot.lane.b32.xlu0 %v143, 96
  %v508 = vpop.permute.xlu0 %507
  %v514 = vsel %vm36, %v486, 0
  %v517 = vsel %vm36, %v488, 0
  %v520 = vsel %vm36, %v490, 0
  %v523 = vsel %vm36, %v492, 0
  %525 = vmatprep.subr.mxu0 0.0
  %526 = vmatpush1.msra.mxu0 %v502
  %527 = vmatprep.subr.mxu0 0.0
  %528 = vmatpush1.msra.mxu0 %v504
  %529 = vmatprep.subr.mxu0 0.0
  %530 = vmatpush1.msra.mxu0 %v506
  %531 = vmatprep.subr.mxu0 0.0
  %532 = vmatpush1.msra.mxu0 %v508
  %533 = vmatprep.subr.mxu0 0.0
  %534 = vmatpush1.msra.mxu0 0.0
  %535 = vmatprep.subr.mxu0 0.0
  %536 = vmatpush1.msra.mxu0 0.0
  %537 = vmatprep.subr.mxu0 0.0
  %538 = vmatpush1.msra.mxu0 0.0
  %539 = vmatprep.subr.mxu0 0.0
  %540 = vmatpush1.msra.mxu0 0.0
  %541 = vmatprep.subr.mxu0 0.0
  %542 = vmatpush1.msra.mxu0 0.0
  %543 = vmatprep.subr.mxu0 0.0
  %544 = vmatpush1.msra.mxu0 0.0
  %545 = vmatprep.subr.mxu0 0.0
  %546 = vmatpush1.msra.mxu0 0.0
  %547 = vmatprep.subr.mxu0 0.0
  %548 = vmatpush1.msra.mxu0 0.0
  %549 = vmatprep.subr.mxu0 0.0
  %550 = vmatpush1.msra.mxu0 0.0
  %551 = vmatprep.subr.mxu0 0.0
  %552 = vmatpush1.msra.mxu0 0.0
  %553 = vmatprep.subr.mxu0 0.0
  %554 = vmatpush1.msra.mxu0 0.0
  %555 = vmatprep.subr.mxu0 0.0
  %556 = vmatpush1.msra.mxu0 0.0
  %557 = vmatprep.subr.mxu0 0.0
  %558 = vmatpush1.msra.mxu0 0.0
  %559 = vmatprep.subr.mxu0 0.0
  %560 = vmatpush1.msra.mxu0 0.0
  %561 = vmatprep.subr.mxu0 0.0
  %562 = vmatpush1.msra.mxu0 0.0
  %563 = vmatprep.subr.mxu0 0.0
  %564 = vmatpush1.msra.mxu0 0.0
  %565 = vmatprep.subr.mxu0 0.0
  %566 = vmatpush1.msra.mxu0 0.0
  %567 = vmatprep.subr.mxu0 0.0
  %568 = vmatpush1.msra.mxu0 0.0
  %569 = vmatprep.subr.mxu0 0.0
  %570 = vmatpush1.msra.mxu0 0.0
  %571 = vmatprep.subr.mxu0 0.0
  %572 = vmatpush1.msra.mxu0 0.0
  %573 = vmatprep.subr.mxu0 0.0
  %574 = vmatpush1.msra.mxu0 0.0
  %575 = vmatprep.subr.mxu0 0.0
  %576 = vmatpush1.msra.mxu0 0.0
  %577 = vmatprep.subr.mxu0 0.0
  %578 = vmatpush1.msra.mxu0 0.0
  %579 = vmatprep.subr.mxu0 0.0
  %580 = vmatpush1.msra.mxu0 0.0
  %581 = vmatprep.subr.mxu0 0.0
  %582 = vmatpush1.msra.mxu0 0.0
  %583 = vmatprep.subr.mxu0 0.0
  %584 = vmatpush1.msra.mxu0 0.0
  %585 = vmatprep.subr.mxu0 0.0
  %586 = vmatpush1.msra.mxu0 0.0
  %587 = vmatprep.subr.mxu0 0.0
  %588 = vmatpush1.msra.mxu0 0.0
  %589 = vmatprep.mubr.f32.mxu0 0.0
  %590 = vmatmul.mubr.f32.gmra.mrb[0].mxu0 %v514
  %v591 = vpop.f32.mrb[0].mxu0
  %v592 = vadd.f32 0.0, %v591
  %v593 = vpop.f32.mrb[0].mxu0
  %594 = vmatprep.mubr.f32.mxu0 0.0
  %595 = vmatmul.mubr.f32.gmra.mrb[0].mxu0 %v517
  %v596 = vpop.f32.mrb[0].mxu0
  %v597 = vadd.f32 0.0, %v596
  %v598 = vpop.f32.mrb[0].mxu0
  %599 = vmatprep.mubr.f32.mxu0 0.0
  %600 = vmatmul.mubr.f32.gmra.mrb[0].mxu0 %v520
  %v601 = vpop.f32.mrb[0].mxu0
  %v602 = vadd.f32 0.0, %v601
  %v603 = vpop.f32.mrb[0].mxu0
  %604 = vmatprep.mubr.f32.mxu0 0.0
  %605 = vmatmul.mubr.f32.gmra.mrb[0].mxu0 %v523
  %v606 = vpop.f32.mrb[0].mxu0
  %v607 = vadd.f32 0.0, %v606
  %v608 = vpop.f32.mrb[0].mxu0
  %609 = vdwg.mxu0
  %610 = vrot.lane.b32.xlu0 %v148, 96
  %v611 = vpop.permute.xlu0 %610
  %612 = vrot.lane.b32.xlu0 %v153, 96
  %v613 = vpop.permute.xlu0 %612
  %614 = vrot.lane.b32.xlu0 %v158, 96
  %v615 = vpop.permute.xlu0 %614
  %616 = vrot.lane.b32.xlu0 %v163, 96
  %v617 = vpop.permute.xlu0 %616
  %v623 = vsel %vm36, %v494, 0
  %v626 = vsel %vm36, %v496, 0
  %v629 = vsel %vm36, %v498, 0
  %v632 = vsel %vm36, %v500, 0
  %634 = vmatprep.subr.mxu0 0.0
  %635 = vmatpush1.msra.mxu0 %v611
  %636 = vmatprep.subr.mxu0 0.0
  %637 = vmatpush1.msra.mxu0 %v613
  %638 = vmatprep.subr.mxu0 0.0
  %639 = vmatpush1.msra.mxu0 %v615
  %640 = vmatprep.subr.mxu0 0.0
  %641 = vmatpush1.msra.mxu0 %v617
  %642 = vmatprep.subr.mxu0 0.0
  %643 = vmatpush1.msra.mxu0 0.0
  %644 = vmatprep.subr.mxu0 0.0
  %645 = vmatpush1.msra.mxu0 0.0
  %646 = vmatprep.subr.mxu0 0.0
  %647 = vmatpush1.msra.mxu0 0.0
  %648 = vmatprep.subr.mxu0 0.0
  %649 = vmatpush1.msra.mxu0 0.0
  %650 = vmatprep.subr.mxu0 0.0
  %651 = vmatpush1.msra.mxu0 0.0
  %652 = vmatprep.subr.mxu0 0.0
  %653 = vmatpush1.msra.mxu0 0.0
  %654 = vmatprep.subr.mxu0 0.0
  %655 = vmatpush1.msra.mxu0 0.0
  %656 = vmatprep.subr.mxu0 0.0
  %657 = vmatpush1.msra.mxu0 0.0
  %658 = vmatprep.subr.mxu0 0.0
  %659 = vmatpush1.msra.mxu0 0.0
  %660 = vmatprep.subr.mxu0 0.0
  %661 = vmatpush1.msra.mxu0 0.0
  %662 = vmatprep.subr.mxu0 0.0
  %663 = vmatpush1.msra.mxu0 0.0
  %664 = vmatprep.subr.mxu0 0.0
  %665 = vmatpush1.msra.mxu0 0.0
  %666 = vmatprep.subr.mxu0 0.0
  %667 = vmatpush1.msra.mxu0 0.0
  %668 = vmatprep.subr.mxu0 0.0
  %669 = vmatpush1.msra.mxu0 0.0
  %670 = vmatprep.subr.mxu0 0.0
  %671 = vmatpush1.msra.mxu0 0.0
  %672 = vmatprep.subr.mxu0 0.0
  %673 = vmatpush1.msra.mxu0 0.0
  %674 = vmatprep.subr.mxu0 0.0
  %675 = vmatpush1.msra.mxu0 0.0
  %676 = vmatprep.subr.mxu0 0.0
  %677 = vmatpush1.msra.mxu0 0.0
  %678 = vmatprep.subr.mxu0 0.0
  %679 = vmatpush1.msra.mxu0 0.0
  %680 = vmatprep.subr.mxu0 0.0
  %681 = vmatpush1.msra.mxu0 0.0
  %682 = vmatprep.subr.mxu0 0.0
  %683 = vmatpush1.msra.mxu0 0.0
  %684 = vmatprep.subr.mxu0 0.0
  %685 = vmatpush1.msra.mxu0 0.0
  %686 = vmatprep.subr.mxu0 0.0
  %687 = vmatpush1.msra.mxu0 0.0
  %688 = vmatprep.subr.mxu0 0.0
  %689 = vmatpush1.msra.mxu0 0.0
  %690 = vmatprep.subr.mxu0 0.0
  %691 = vmatpush1.msra.mxu0 0.0
  %692 = vmatprep.subr.mxu0 0.0
  %693 = vmatpush1.msra.mxu0 0.0
  %694 = vmatprep.subr.mxu0 0.0
  %695 = vmatpush1.msra.mxu0 0.0
  %696 = vmatprep.subr.mxu0 0.0
  %697 = vmatpush1.msra.mxu0 0.0
  %698 = vmatprep.mubr.f32.mxu0 0.0
  %699 = vmatmul.mubr.f32.gmra.mrb[0].mxu0 %v623
  %v700 = vpop.f32.mrb[0].mxu0
  %v701 = vadd.f32 0.0, %v700
  %v702 = vpop.f32.mrb[0].mxu0
  %703 = vmatprep.mubr.f32.mxu0 0.0
  %704 = vmatmul.mubr.f32.gmra.mrb[0].mxu0 %v626
  %v705 = vpop.f32.mrb[0].mxu0
  %v706 = vadd.f32 0.0, %v705
  %v707 = vpop.f32.mrb[0].mxu0
  %708 = vmatprep.mubr.f32.mxu0 0.0
  %709 = vmatmul.mubr.f32.gmra.mrb[0].mxu0 %v629
  %v710 = vpop.f32.mrb[0].mxu0
  %v711 = vadd.f32 0.0, %v710
  %v712 = vpop.f32.mrb[0].mxu0
  %713 = vmatprep.mubr.f32.mxu0 0.0
  %714 = vmatmul.mubr.f32.gmra.mrb[0].mxu0 %v632
  %v715 = vpop.f32.mrb[0].mxu0
  %v716 = vadd.f32 0.0, %v715
  %v717 = vpop.f32.mrb[0].mxu0
  %718 = vdwg.mxu0
  %719 = vrot.lane.b32.xlu0 %v170, 80
  %v720 = vpop.permute.xlu0 %719
  %721 = vrot.lane.b32.xlu0 %v171, 80
  %v722 = vpop.permute.xlu0 %721
  %723 = vrot.lane.b32.xlu0 %v172, 80
  %v724 = vpop.permute.xlu0 %723
  %725 = vrot.lane.b32.xlu0 %v173, 80
  %v726 = vpop.permute.xlu0 %725
  %727 = vrot.lane.b32.xlu0 %v128, 64
  %v728 = vpop.permute.xlu0 %727
  %729 = vrot.lane.b32.xlu0 %v133, 64
  %v730 = vpop.permute.xlu0 %729
  %731 = vrot.lane.b32.xlu0 %v138, 64
  %v732 = vpop.permute.xlu0 %731
  %733 = vrot.lane.b32.xlu0 %v143, 64
  %v734 = vpop.permute.xlu0 %733
  %v735 = vsel %vm190, %v720, 0
  %v737 = vsel %vm190, %v722, 0
  %v739 = vsel %vm190, %v724, 0
  %v741 = vsel %vm190, %v726, 0
  %v743 = vsel %vm190, %v728, 0
  %v745 = vsel %vm190, %v730, 0
  %v747 = vsel %vm190, %v732, 0
  %v749 = vsel %vm190, %v734, 0
  %751 = vmatprep.subr.mxu0 0.0
  %752 = vmatpush1.xpose.msra.mxu0 %v743
  %753 = vmatprep.subr.mxu0 0.0
  %754 = vmatpush1.xpose.msra.mxu0 %v745
  %755 = vmatprep.subr.mxu0 0.0
  %756 = vmatpush1.xpose.msra.mxu0 %v747
  %757 = vmatprep.subr.mxu0 0.0
  %758 = vmatpush1.xpose.msra.mxu0 %v749
  %759 = vmatprep.subr.mxu0 0.0
  %760 = vmatpush1.xpose.msra.mxu0 0.0
  %761 = vmatprep.subr.mxu0 0.0
  %762 = vmatpush1.xpose.msra.mxu0 0.0
  %763 = vmatprep.subr.mxu0 0.0
  %764 = vmatpush1.xpose.msra.mxu0 0.0
  %765 = vmatprep.subr.mxu0 0.0
  %766 = vmatpush1.xpose.msra.mxu0 0.0
  %767 = vmatprep.subr.mxu0 0.0
  %768 = vmatpush1.xpose.msra.mxu0 0.0
  %769 = vmatprep.subr.mxu0 0.0
  %770 = vmatpush1.xpose.msra.mxu0 0.0
  %771 = vmatprep.subr.mxu0 0.0
  %772 = vmatpush1.xpose.msra.mxu0 0.0
  %773 = vmatprep.subr.mxu0 0.0
  %774 = vmatpush1.xpose.msra.mxu0 0.0
  %775 = vmatprep.subr.mxu0 0.0
  %776 = vmatpush1.xpose.msra.mxu0 0.0
  %777 = vmatprep.subr.mxu0 0.0
  %778 = vmatpush1.xpose.msra.mxu0 0.0
  %779 = vmatprep.subr.mxu0 0.0
  %780 = vmatpush1.xpose.msra.mxu0 0.0
  %781 = vmatprep.subr.mxu0 0.0
  %782 = vmatpush1.xpose.msra.mxu0 0.0
  %783 = vmatprep.subr.mxu0 0.0
  %784 = vmatpush1.xpose.msra.mxu0 0.0
  %785 = vmatprep.subr.mxu0 0.0
  %786 = vmatpush1.xpose.msra.mxu0 0.0
  %787 = vmatprep.subr.mxu0 0.0
  %788 = vmatpush1.xpose.msra.mxu0 0.0
  %789 = vmatprep.subr.mxu0 0.0
  %790 = vmatpush1.xpose.msra.mxu0 0.0
  %791 = vmatprep.subr.mxu0 0.0
  %792 = vmatpush1.xpose.msra.mxu0 0.0
  %793 = vmatprep.subr.mxu0 0.0
  %794 = vmatpush1.xpose.msra.mxu0 0.0
  %795 = vmatprep.subr.mxu0 0.0
  %796 = vmatpush1.xpose.msra.mxu0 0.0
  %797 = vmatprep.subr.mxu0 0.0
  %798 = vmatpush1.xpose.msra.mxu0 0.0
  %799 = vmatprep.subr.mxu0 0.0
  %800 = vmatpush1.xpose.msra.mxu0 0.0
  %801 = vmatprep.subr.mxu0 0.0
  %802 = vmatpush1.xpose.msra.mxu0 0.0
  %803 = vmatprep.subr.mxu0 0.0
  %804 = vmatpush1.xpose.msra.mxu0 0.0
  %805 = vmatprep.subr.mxu0 0.0
  %806 = vmatpush1.xpose.msra.mxu0 0.0
  %807 = vmatprep.subr.mxu0 0.0
  %808 = vmatpush1.xpose.msra.mxu0 0.0
  %809 = vmatprep.subr.mxu0 0.0
  %810 = vmatpush1.xpose.msra.mxu0 0.0
  %811 = vmatprep.subr.mxu0 0.0
  %812 = vmatpush1.xpose.msra.mxu0 0.0
  %813 = vmatprep.subr.mxu0 0.0
  %814 = vmatpush1.xpose.msra.mxu0 0.0
  %815 = vmatprep.mubr.f32.mxu0 0.0
  %816 = vmatmul.mubr.f32.gmra.mrb[0].mxu0 %v735
  %v817 = vpop.f32.mrb[0].mxu0
  %v818 = vadd.f32 0.0, %v817
  %v819 = vpop.f32.mrb[0].mxu0
  %820 = vmatprep.mubr.f32.mxu0 0.0
  %821 = vmatmul.mubr.f32.gmra.mrb[0].mxu0 %v737
  %v822 = vpop.f32.mrb[0].mxu0
  %v823 = vadd.f32 0.0, %v822
  %v824 = vpop.f32.mrb[0].mxu0
  %825 = vmatprep.mubr.f32.mxu0 0.0
  %826 = vmatmul.mubr.f32.gmra.mrb[0].mxu0 %v739
  %v827 = vpop.f32.mrb[0].mxu0
  %v828 = vadd.f32 0.0, %v827
  %v829 = vpop.f32.mrb[0].mxu0
  %830 = vmatprep.mubr.f32.mxu0 0.0
  %831 = vmatmul.mubr.f32.gmra.mrb[0].mxu0 %v741
  %v832 = vpop.f32.mrb[0].mxu0
  %v833 = vadd.f32 0.0, %v832
  %v834 = vpop.f32.mrb[0].mxu0
  %835 = vdwg.mxu0
  %836 = vrot.lane.b32.xlu0 %v174, 80
  %v837 = vpop.permute.xlu0 %836
  %838 = vrot.lane.b32.xlu0 %v175, 80
  %v839 = vpop.permute.xlu0 %838
  %840 = vrot.lane.b32.xlu0 %v176, 80
  %v841 = vpop.permute.xlu0 %840
  %842 = vrot.lane.b32.xlu0 %v177, 80
  %v843 = vpop.permute.xlu0 %842
  %844 = vrot.lane.b32.xlu0 %v148, 64
  %v845 = vpop.permute.xlu0 %844
  %846 = vrot.lane.b32.xlu0 %v153, 64
  %v847 = vpop.permute.xlu0 %846
  %848 = vrot.lane.b32.xlu0 %v158, 64
  %v849 = vpop.permute.xlu0 %848
  %850 = vrot.lane.b32.xlu0 %v163, 64
  %v851 = vpop.permute.xlu0 %850
  %v852 = vsel %vm190, %v837, 0
  %v854 = vsel %vm190, %v839, 0
  %v856 = vsel %vm190, %v841, 0
  %v858 = vsel %vm190, %v843, 0
  %v860 = vsel %vm190, %v845, 0
  %v862 = vsel %vm190, %v847, 0
  %v864 = vsel %vm190, %v849, 0
  %v866 = vsel %vm190, %v851, 0
  %868 = vmatprep.subr.mxu0 0.0
  %869 = vmatpush1.xpose.msra.mxu0 %v860
  %870 = vmatprep.subr.mxu0 0.0
  %871 = vmatpush1.xpose.msra.mxu0 %v862
  %872 = vmatprep.subr.mxu0 0.0
  %873 = vmatpush1.xpose.msra.mxu0 %v864
  %874 = vmatprep.subr.mxu0 0.0
  %875 = vmatpush1.xpose.msra.mxu0 %v866
  %876 = vmatprep.subr.mxu0 0.0
  %877 = vmatpush1.xpose.msra.mxu0 0.0
  %878 = vmatprep.subr.mxu0 0.0
  %879 = vmatpush1.xpose.msra.mxu0 0.0
  %880 = vmatprep.subr.mxu0 0.0
  %881 = vmatpush1.xpose.msra.mxu0 0.0
  %882 = vmatprep.subr.mxu0 0.0
  %883 = vmatpush1.xpose.msra.mxu0 0.0
  %884 = vmatprep.subr.mxu0 0.0
  %885 = vmatpush1.xpose.msra.mxu0 0.0
  %886 = vmatprep.subr.mxu0 0.0
  %887 = vmatpush1.xpose.msra.mxu0 0.0
  %888 = vmatprep.subr.mxu0 0.0
  %889 = vmatpush1.xpose.msra.mxu0 0.0
  %890 = vmatprep.subr.mxu0 0.0
  %891 = vmatpush1.xpose.msra.mxu0 0.0
  %892 = vmatprep.subr.mxu0 0.0
  %893 = vmatpush1.xpose.msra.mxu0 0.0
  %894 = vmatprep.subr.mxu0 0.0
  %895 = vmatpush1.xpose.msra.mxu0 0.0
  %896 = vmatprep.subr.mxu0 0.0
  %897 = vmatpush1.xpose.msra.mxu0 0.0
  %898 = vmatprep.subr.mxu0 0.0
  %899 = vmatpush1.xpose.msra.mxu0 0.0
  %900 = vmatprep.subr.mxu0 0.0
  %901 = vmatpush1.xpose.msra.mxu0 0.0
  %902 = vmatprep.subr.mxu0 0.0
  %903 = vmatpush1.xpose.msra.mxu0 0.0
  %904 = vmatprep.subr.mxu0 0.0
  %905 = vmatpush1.xpose.msra.mxu0 0.0
  %906 = vmatprep.subr.mxu0 0.0
  %907 = vmatpush1.xpose.msra.mxu0 0.0
  %908 = vmatprep.subr.mxu0 0.0
  %909 = vmatpush1.xpose.msra.mxu0 0.0
  %910 = vmatprep.subr.mxu0 0.0
  %911 = vmatpush1.xpose.msra.mxu0 0.0
  %912 = vmatprep.subr.mxu0 0.0
  %913 = vmatpush1.xpose.msra.mxu0 0.0
  %914 = vmatprep.subr.mxu0 0.0
  %915 = vmatpush1.xpose.msra.mxu0 0.0
  %916 = vmatprep.subr.mxu0 0.0
  %917 = vmatpush1.xpose.msra.mxu0 0.0
  %918 = vmatprep.subr.mxu0 0.0
  %919 = vmatpush1.xpose.msra.mxu0 0.0
  %920 = vmatprep.subr.mxu0 0.0
  %921 = vmatpush1.xpose.msra.mxu0 0.0
  %922 = vmatprep.subr.mxu0 0.0
  %923 = vmatpush1.xpose.msra.mxu0 0.0
  %924 = vmatprep.subr.mxu0 0.0
  %925 = vmatpush1.xpose.msra.mxu0 0.0
  %926 = vmatprep.subr.mxu0 0.0
  %927 = vmatpush1.xpose.msra.mxu0 0.0
  %928 = vmatprep.subr.mxu0 0.0
  %929 = vmatpush1.xpose.msra.mxu0 0.0
  %930 = vmatprep.subr.mxu0 0.0
  %931 = vmatpush1.xpose.msra.mxu0 0.0
  %932 = vmatprep.mubr.f32.mxu0 0.0
  %933 = vmatmul.mubr.f32.gmra.mrb[0].mxu0 %v852
  %v934 = vpop.f32.mrb[0].mxu0
  %v935 = vadd.f32 0.0, %v934
  %v936 = vpop.f32.mrb[0].mxu0
  %937 = vmatprep.mubr.f32.mxu0 0.0
  %938 = vmatmul.mubr.f32.gmra.mrb[0].mxu0 %v854
  %v939 = vpop.f32.mrb[0].mxu0
  %v940 = vadd.f32 0.0, %v939
  %v941 = vpop.f32.mrb[0].mxu0
  %942 = vmatprep.mubr.f32.mxu0 0.0
  %943 = vmatmul.mubr.f32.gmra.mrb[0].mxu0 %v856
  %v944 = vpop.f32.mrb[0].mxu0
  %v945 = vadd.f32 0.0, %v944
  %v946 = vpop.f32.mrb[0].mxu0
  %947 = vmatprep.mubr.f32.mxu0 0.0
  %948 = vmatmul.mubr.f32.gmra.mrb[0].mxu0 %v858
  %v949 = vpop.f32.mrb[0].mxu0
  %v950 = vadd.f32 0.0, %v949
  %v951 = vpop.f32.mrb[0].mxu0
  %952 = vdwg.mxu0
  %v953 = vsel %vm36, %v818, -inf
  %954 = vmax.xlane.f32.xlu0 %v953
  %v955 = vpop.xlane.xlu0 %954
  %v956 = vsel %vm36, %v823, -inf
  %957 = vmax.xlane.f32.xlu0 %v956
  %v958 = vpop.xlane.xlu0 %957
  %v959 = vsel %vm36, %v828, -inf
  %960 = vmax.xlane.f32.xlu0 %v959
  %v961 = vpop.xlane.xlu0 %960
  %v962 = vsel %vm36, %v833, -inf
  %963 = vmax.xlane.f32.xlu0 %v962
  %v964 = vpop.xlane.xlu0 %963
  %v965 = vsel %vm36, %v935, -inf
  %966 = vmax.xlane.f32.xlu0 %v965
  %v967 = vpop.xlane.xlu0 %966
  %v968 = vsel %vm36, %v940, -inf
  %969 = vmax.xlane.f32.xlu0 %v968
  %v970 = vpop.xlane.xlu0 %969
  %v971 = vsel %vm36, %v945, -inf
  %972 = vmax.xlane.f32.xlu0 %v971
  %v973 = vpop.xlane.xlu0 %972
  %v974 = vsel %vm36, %v950, -inf
  %975 = vmax.xlane.f32.xlu0 %v974
  %v976 = vpop.xlane.xlu0 %975
  %v977 = vsub.f32 %v818, %v955
  %v978 = vsub.f32 %v823, %v958
  %v979 = vsub.f32 %v828, %v961
  %v980 = vsub.f32 %v833, %v964
  %v981 = vsub.f32 %v935, %v967
  %v982 = vsub.f32 %v940, %v970
  %v983 = vsub.f32 %v945, %v973
  %v984 = vsub.f32 %v950, %v976
  %v985 = vmul.f32 %v977, 1.442695
  %v986 = vpow.pop %v985
  %v987 = vmul.f32 %v978, 1.442695
  %v988 = vpow.pop %v987
  %v989 = vmul.f32 %v979, 1.442695
  %v990 = vpow.pop %v989
  %v991 = vmul.f32 %v980, 1.442695
  %v992 = vpow.pop %v991
  %v993 = vmul.f32 %v981, 1.442695
  %v994 = vpow.pop %v993
  %v995 = vmul.f32 %v982, 1.442695
  %v996 = vpow.pop %v995
  %v997 = vmul.f32 %v983, 1.442695
  %v998 = vpow.pop %v997
  %v999 = vmul.f32 %v984, 1.442695
  %v1000 = vpow.pop %v999
  %v1001 = vsel %vm36, %v986, 0.0
  %1002 = vadd.xlane.f32.xlu0 %v1001
  %v1003 = vpop.xlane.xlu0 %1002
  %v1004 = vsel %vm36, %v988, 0.0
  %1005 = vadd.xlane.f32.xlu0 %v1004
  %v1006 = vpop.xlane.xlu0 %1005
  %v1007 = vsel %vm36, %v990, 0.0
  %1008 = vadd.xlane.f32.xlu0 %v1007
  %v1009 = vpop.xlane.xlu0 %1008
  %v1010 = vsel %vm36, %v992, 0.0
  %1011 = vadd.xlane.f32.xlu0 %v1010
  %v1012 = vpop.xlane.xlu0 %1011
  %v1013 = vsel %vm36, %v994, 0.0
  %1014 = vadd.xlane.f32.xlu0 %v1013
  %v1015 = vpop.xlane.xlu0 %1014
  %v1016 = vsel %vm36, %v996, 0.0
  %1017 = vadd.xlane.f32.xlu0 %v1016
  %v1018 = vpop.xlane.xlu0 %1017
  %v1019 = vsel %vm36, %v998, 0.0
  %1020 = vadd.xlane.f32.xlu0 %v1019
  %v1021 = vpop.xlane.xlu0 %1020
  %v1022 = vsel %vm36, %v1000, 0.0
  %1023 = vadd.xlane.f32.xlu0 %v1022
  %v1024 = vpop.xlane.xlu0 %1023
  %v1025 = vrcp.pop %v1003
  %v1026 = vmul.f32 %v986, %v1025
  %v1027 = vrcp.pop %v1006
  %v1028 = vmul.f32 %v988, %v1027
  %v1029 = vrcp.pop %v1009
  %v1030 = vmul.f32 %v990, %v1029
  %v1031 = vrcp.pop %v1012
  %v1032 = vmul.f32 %v992, %v1031
  %v1033 = vrcp.pop %v1015
  %v1034 = vmul.f32 %v994, %v1033
  %v1035 = vrcp.pop %v1018
  %v1036 = vmul.f32 %v996, %v1035
  %v1037 = vrcp.pop %v1021
  %v1038 = vmul.f32 %v998, %v1037
  %v1039 = vrcp.pop %v1024
  %v1040 = vmul.f32 %v1000, %v1039
  %1041 = vrot.lane.b32.xlu0 %v128, 48
  %v1042 = vpop.permute.xlu0 %1041
  %1043 = vrot.lane.b32.xlu0 %v133, 48
  %v1044 = vpop.permute.xlu0 %1043
  %1045 = vrot.lane.b32.xlu0 %v138, 48
  %v1046 = vpop.permute.xlu0 %1045
  %1047 = vrot.lane.b32.xlu0 %v143, 48
  %v1048 = vpop.permute.xlu0 %1047
  %v1054 = vsel %vm36, %v1026, 0
  %v1057 = vsel %vm36, %v1028, 0
  %v1060 = vsel %vm36, %v1030, 0
  %v1063 = vsel %vm36, %v1032, 0
  %1065 = vmatprep.subr.mxu0 0.0
  %1066 = vmatpush1.msra.mxu0 %v1042
  %1067 = vmatprep.subr.mxu0 0.0
  %1068 = vmatpush1.msra.mxu0 %v1044
  %1069 = vmatprep.subr.mxu0 0.0
  %1070 = vmatpush1.msra.mxu0 %v1046
  %1071 = vmatprep.subr.mxu0 0.0
  %1072 = vmatpush1.msra.mxu0 %v1048
  %1073 = vmatprep.subr.mxu0 0.0
  %1074 = vmatpush1.msra.mxu0 0.0
  %1075 = vmatprep.subr.mxu0 0.0
  %1076 = vmatpush1.msra.mxu0 0.0
  %1077 = vmatprep.subr.mxu0 0.0
  %1078 = vmatpush1.msra.mxu0 0.0
  %1079 = vmatprep.subr.mxu0 0.0
  %1080 = vmatpush1.msra.mxu0 0.0
  %1081 = vmatprep.subr.mxu0 0.0
  %1082 = vmatpush1.msra.mxu0 0.0
  %1083 = vmatprep.subr.mxu0 0.0
  %1084 = vmatpush1.msra.mxu0 0.0
  %1085 = vmatprep.subr.mxu0 0.0
  %1086 = vmatpush1.msra.mxu0 0.0
  %1087 = vmatprep.subr.mxu0 0.0
  %1088 = vmatpush1.msra.mxu0 0.0
  %1089 = vmatprep.subr.mxu0 0.0
  %1090 = vmatpush1.msra.mxu0 0.0
  %1091 = vmatprep.subr.mxu0 0.0
  %1092 = vmatpush1.msra.mxu0 0.0
  %1093 = vmatprep.subr.mxu0 0.0
  %1094 = vmatpush1.msra.mxu0 0.0
  %1095 = vmatprep.subr.mxu0 0.0
  %1096 = vmatpush1.msra.mxu0 0.0
  %1097 = vmatprep.subr.mxu0 0.0
  %1098 = vmatpush1.msra.mxu0 0.0
  %1099 = vmatprep.subr.mxu0 0.0
  %1100 = vmatpush1.msra.mxu0 0.0
  %1101 = vmatprep.subr.mxu0 0.0
  %1102 = vmatpush1.msra.mxu0 0.0
  %1103 = vmatprep.subr.mxu0 0.0
  %1104 = vmatpush1.msra.mxu0 0.0
  %1105 = vmatprep.subr.mxu0 0.0
  %1106 = vmatpush1.msra.mxu0 0.0
  %1107 = vmatprep.subr.mxu0 0.0
  %1108 = vmatpush1.msra.mxu0 0.0
  %1109 = vmatprep.subr.mxu0 0.0
  %1110 = vmatpush1.msra.mxu0 0.0
  %1111 = vmatprep.subr.mxu0 0.0
  %1112 = vmatpush1.msra.mxu0 0.0
  %1113 = vmatprep.subr.mxu0 0.0
  %1114 = vmatpush1.msra.mxu0 0.0
  %1115 = vmatprep.subr.mxu0 0.0
  %1116 = vmatpush1.msra.mxu0 0.0
  %1117 = vmatprep.subr.mxu0 0.0
  %1118 = vmatpush1.msra.mxu0 0.0
  %1119 = vmatprep.subr.mxu0 0.0
  %1120 = vmatpush1.msra.mxu0 0.0
  %1121 = vmatprep.subr.mxu0 0.0
  %1122 = vmatpush1.msra.mxu0 0.0
  %1123 = vmatprep.subr.mxu0 0.0
  %1124 = vmatpush1.msra.mxu0 0.0
  %1125 = vmatprep.subr.mxu0 0.0
  %1126 = vmatpush1.msra.mxu0 0.0
  %1127 = vmatprep.subr.mxu0 0.0
  %1128 = vmatpush1.msra.mxu0 0.0
  %1129 = vmatprep.mubr.f32.mxu0 0.0
  %1130 = vmatmul.mubr.f32.gmra.mrb[0].mxu0 %v1054
  %v1131 = vpop.f32.mrb[0].mxu0
  %v1132 = vadd.f32 0.0, %v1131
  %v1133 = vpop.f32.mrb[0].mxu0
  %1134 = vmatprep.mubr.f32.mxu0 0.0
  %1135 = vmatmul.mubr.f32.gmra.mrb[0].mxu0 %v1057
  %v1136 = vpop.f32.mrb[0].mxu0
  %v1137 = vadd.f32 0.0, %v1136
  %v1138 = vpop.f32.mrb[0].mxu0
  %1139 = vmatprep.mubr.f32.mxu0 0.0
  %1140 = vmatmul.mubr.f32.gmra.mrb[0].mxu0 %v1060
  %v1141 = vpop.f32.mrb[0].mxu0
  %v1142 = vadd.f32 0.0, %v1141
  %v1143 = vpop.f32.mrb[0].mxu0
  %1144 = vmatprep.mubr.f32.mxu0 0.0
  %1145 = vmatmul.mubr.f32.gmra.mrb[0].mxu0 %v1063
  %v1146 = vpop.f32.mrb[0].mxu0
  %v1147 = vadd.f32 0.0, %v1146
  %v1148 = vpop.f32.mrb[0].mxu0
  %1149 = vdwg.mxu0
  %1150 = vrot.lane.b32.xlu0 %v148, 48
  %v1151 = vpop.permute.xlu0 %1150
  %1152 = vrot.lane.b32.xlu0 %v153, 48
  %v1153 = vpop.permute.xlu0 %1152
  %1154 = vrot.lane.b32.xlu0 %v158, 48
  %v1155 = vpop.permute.xlu0 %1154
  %1156 = vrot.lane.b32.xlu0 %v163, 48
  %v1157 = vpop.permute.xlu0 %1156
  %v1163 = vsel %vm36, %v1034, 0
  %v1166 = vsel %vm36, %v1036, 0
  %v1169 = vsel %vm36, %v1038, 0
  %v1172 = vsel %vm36, %v1040, 0
  %1174 = vmatprep.subr.mxu0 0.0
  %1175 = vmatpush1.msra.mxu0 %v1151
  %1176 = vmatprep.subr.mxu0 0.0
  %1177 = vmatpush1.msra.mxu0 %v1153
  %1178 = vmatprep.subr.mxu0 0.0
  %1179 = vmatpush1.msra.mxu0 %v1155
  %1180 = vmatprep.subr.mxu0 0.0
  %1181 = vmatpush1.msra.mxu0 %v1157
  %1182 = vmatprep.subr.mxu0 0.0
  %1183 = vmatpush1.msra.mxu0 0.0
  %1184 = vmatprep.subr.mxu0 0.0
  %1185 = vmatpush1.msra.mxu0 0.0
  %1186 = vmatprep.subr.mxu0 0.0
  %1187 = vmatpush1.msra.mxu0 0.0
  %1188 = vmatprep.subr.mxu0 0.0
  %1189 = vmatpush1.msra.mxu0 0.0
  %1190 = vmatprep.subr.mxu0 0.0
  %1191 = vmatpush1.msra.mxu0 0.0
  %1192 = vmatprep.subr.mxu0 0.0
  %1193 = vmatpush1.msra.mxu0 0.0
  %1194 = vmatprep.subr.mxu0 0.0
  %1195 = vmatpush1.msra.mxu0 0.0
  %1196 = vmatprep.subr.mxu0 0.0
  %1197 = vmatpush1.msra.mxu0 0.0
  %1198 = vmatprep.subr.mxu0 0.0
  %1199 = vmatpush1.msra.mxu0 0.0
  %1200 = vmatprep.subr.mxu0 0.0
  %1201 = vmatpush1.msra.mxu0 0.0
  %1202 = vmatprep.subr.mxu0 0.0
  %1203 = vmatpush1.msra.mxu0 0.0
  %1204 = vmatprep.subr.mxu0 0.0
  %1205 = vmatpush1.msra.mxu0 0.0
  %1206 = vmatprep.subr.mxu0 0.0
  %1207 = vmatpush1.msra.mxu0 0.0
  %1208 = vmatprep.subr.mxu0 0.0
  %1209 = vmatpush1.msra.mxu0 0.0
  %1210 = vmatprep.subr.mxu0 0.0
  %1211 = vmatpush1.msra.mxu0 0.0
  %1212 = vmatprep.subr.mxu0 0.0
  %1213 = vmatpush1.msra.mxu0 0.0
  %1214 = vmatprep.subr.mxu0 0.0
  %1215 = vmatpush1.msra.mxu0 0.0
  %1216 = vmatprep.subr.mxu0 0.0
  %1217 = vmatpush1.msra.mxu0 0.0
  %1218 = vmatprep.subr.mxu0 0.0
  %1219 = vmatpush1.msra.mxu0 0.0
  %1220 = vmatprep.subr.mxu0 0.0
  %1221 = vmatpush1.msra.mxu0 0.0
  %1222 = vmatprep.subr.mxu0 0.0
  %1223 = vmatpush1.msra.mxu0 0.0
  %1224 = vmatprep.subr.mxu0 0.0
  %1225 = vmatpush1.msra.mxu0 0.0
  %1226 = vmatprep.subr.mxu0 0.0
  %1227 = vmatpush1.msra.mxu0 0.0
  %1228 = vmatprep.subr.mxu0 0.0
  %1229 = vmatpush1.msra.mxu0 0.0
  %1230 = vmatprep.subr.mxu0 0.0
  %1231 = vmatpush1.msra.mxu0 0.0
  %1232 = vmatprep.subr.mxu0 0.0
  %1233 = vmatpush1.msra.mxu0 0.0
  %1234 = vmatprep.subr.mxu0 0.0
  %1235 = vmatpush1.msra.mxu0 0.0
  %1236 = vmatprep.subr.mxu0 0.0
  %1237 = vmatpush1.msra.mxu0 0.0
  %1238 = vmatprep.mubr.f32.mxu0 0.0
  %1239 = vmatmul.mubr.f32.gmra.mrb[0].mxu0 %v1163
  %v1240 = vpop.f32.mrb[0].mxu0
  %v1241 = vadd.f32 0.0, %v1240
  %v1242 = vpop.f32.mrb[0].mxu0
  %1243 = vmatprep.mubr.f32.mxu0 0.0
  %1244 = vmatmul.mubr.f32.gmra.mrb[0].mxu0 %v1166
  %v1245 = vpop.f32.mrb[0].mxu0
  %v1246 = vadd.f32 0.0, %v1245
  %v1247 = vpop.f32.mrb[0].mxu0
  %1248 = vmatprep.mubr.f32.mxu0 0.0
  %1249 = vmatmul.mubr.f32.gmra.mrb[0].mxu0 %v1169
  %v1250 = vpop.f32.mrb[0].mxu0
  %v1251 = vadd.f32 0.0, %v1250
  %v1252 = vpop.f32.mrb[0].mxu0
  %1253 = vmatprep.mubr.f32.mxu0 0.0
  %1254 = vmatmul.mubr.f32.gmra.mrb[0].mxu0 %v1172
  %v1255 = vpop.f32.mrb[0].mxu0
  %v1256 = vadd.f32 0.0, %v1255
  %v1257 = vpop.f32.mrb[0].mxu0
  %1258 = vdwg.mxu0
  %v1260 = vsel %vm190, %v1132, 0
  %v1263 = vsel %vm190, %v1137, 0
  %v1266 = vsel %vm190, %v1142, 0
  %v1269 = vsel %vm190, %v1147, 0
  %v1272 = vsel %vm190, %v1241, 0
  %v1275 = vsel %vm190, %v1246, 0
  %v1278 = vsel %vm190, %v1251, 0
  %v1281 = vsel %vm190, %v1256, 0
  %1283 = vmatprep.subr.mxu0 0.0
  %1284 = vmatpush1.msra.mxu0 %v168
  %1285 = vmatprep.subr.mxu0 0.0
  %1286 = vmatpush1.msra.mxu0 %v169
  %1287 = vmatprep.subr.mxu0 0.0
  %1288 = vmatpush1.msra.mxu0 0.0
  %1289 = vmatprep.subr.mxu0 0.0
  %1290 = vmatpush1.msra.mxu0 0.0
  %1291 = vmatprep.subr.mxu0 0.0
  %1292 = vmatpush1.msra.mxu0 0.0
  %1293 = vmatprep.subr.mxu0 0.0
  %1294 = vmatpush1.msra.mxu0 0.0
  %1295 = vmatprep.subr.mxu0 0.0
  %1296 = vmatpush1.msra.mxu0 0.0
  %1297 = vmatprep.subr.mxu0 0.0
  %1298 = vmatpush1.msra.mxu0 0.0
  %1299 = vmatprep.subr.mxu0 0.0
  %1300 = vmatpush1.msra.mxu0 0.0
  %1301 = vmatprep.subr.mxu0 0.0
  %1302 = vmatpush1.msra.mxu0 0.0
  %1303 = vmatprep.subr.mxu0 0.0
  %1304 = vmatpush1.msra.mxu0 0.0
  %1305 = vmatprep.subr.mxu0 0.0
  %1306 = vmatpush1.msra.mxu0 0.0
  %1307 = vmatprep.subr.mxu0 0.0
  %1308 = vmatpush1.msra.mxu0 0.0
  %1309 = vmatprep.subr.mxu0 0.0
  %1310 = vmatpush1.msra.mxu0 0.0
  %1311 = vmatprep.subr.mxu0 0.0
  %1312 = vmatpush1.msra.mxu0 0.0
  %1313 = vmatprep.subr.mxu0 0.0
  %1314 = vmatpush1.msra.mxu0 0.0
  %1315 = vmatprep.subr.mxu0 0.0
  %1316 = vmatpush1.msra.mxu0 0.0
  %1317 = vmatprep.subr.mxu0 0.0
  %1318 = vmatpush1.msra.mxu0 0.0
  %1319 = vmatprep.subr.mxu0 0.0
  %1320 = vmatpush1.msra.mxu0 0.0
  %1321 = vmatprep.subr.mxu0 0.0
  %1322 = vmatpush1.msra.mxu0 0.0
  %1323 = vmatprep.subr.mxu0 0.0
  %1324 = vmatpush1.msra.mxu0 0.0
  %1325 = vmatprep.subr.mxu0 0.0
  %1326 = vmatpush1.msra.mxu0 0.0
  %1327 = vmatprep.subr.mxu0 0.0
  %1328 = vmatpush1.msra.mxu0 0.0
  %1329 = vmatprep.subr.mxu0 0.0
  %1330 = vmatpush1.msra.mxu0 0.0
  %1331 = vmatprep.subr.mxu0 0.0
  %1332 = vmatpush1.msra.mxu0 0.0
  %1333 = vmatprep.subr.mxu0 0.0
  %1334 = vmatpush1.msra.mxu0 0.0
  %1335 = vmatprep.subr.mxu0 0.0
  %1336 = vmatpush1.msra.mxu0 0.0
  %1337 = vmatprep.subr.mxu0 0.0
  %1338 = vmatpush1.msra.mxu0 0.0
  %1339 = vmatprep.subr.mxu0 0.0
  %1340 = vmatpush1.msra.mxu0 0.0
  %1341 = vmatprep.subr.mxu0 0.0
  %1342 = vmatpush1.msra.mxu0 0.0
  %1343 = vmatprep.subr.mxu0 0.0
  %1344 = vmatpush1.msra.mxu0 0.0
  %1345 = vmatprep.subr.mxu0 0.0
  %1346 = vmatpush1.msra.mxu0 0.0
  %1347 = vmatprep.mubr.f32.mxu0 0.0
  %1348 = vmatmul.mubr.f32.gmra.mrb[0].mxu0 %v1260
  %v1349 = vpop.f32.mrb[0].mxu0
  %v1350 = vadd.f32 0.0, %v1349
  %v1351 = vpop.f32.mrb[0].mxu0
  %1352 = vmatprep.mubr.f32.mxu0 0.0
  %1353 = vmatmul.mubr.f32.gmra.mrb[0].mxu0 %v1263
  %v1354 = vpop.f32.mrb[0].mxu0
  %v1355 = vadd.f32 0.0, %v1354
  %v1356 = vpop.f32.mrb[0].mxu0
  %1357 = vmatprep.mubr.f32.mxu0 0.0
  %1358 = vmatmul.mubr.f32.gmra.mrb[0].mxu0 %v1266
  %v1359 = vpop.f32.mrb[0].mxu0
  %v1360 = vadd.f32 0.0, %v1359
  %v1361 = vpop.f32.mrb[0].mxu0
  %1362 = vmatprep.mubr.f32.mxu0 0.0
  %1363 = vmatmul.mubr.f32.gmra.mrb[0].mxu0 %v1269
  %v1364 = vpop.f32.mrb[0].mxu0
  %v1365 = vadd.f32 0.0, %v1364
  %v1366 = vpop.f32.mrb[0].mxu0
  %1367 = vmatprep.mubr.f32.mxu0 0.0
  %1368 = vmatmul.mubr.f32.gmra.mrb[0].mxu0 %v1272
  %v1369 = vpop.f32.mrb[0].mxu0
  %v1370 = vadd.f32 0.0, %v1369
  %v1371 = vpop.f32.mrb[0].mxu0
  %1372 = vmatprep.mubr.f32.mxu0 0.0
  %1373 = vmatmul.mubr.f32.gmra.mrb[0].mxu0 %v1275
  %v1374 = vpop.f32.mrb[0].mxu0
  %v1375 = vadd.f32 0.0, %v1374
  %v1376 = vpop.f32.mrb[0].mxu0
  %1377 = vmatprep.mubr.f32.mxu0 0.0
  %1378 = vmatmul.mubr.f32.gmra.mrb[0].mxu0 %v1278
  %v1379 = vpop.f32.mrb[0].mxu0
  %v1380 = vadd.f32 0.0, %v1379
  %v1381 = vpop.f32.mrb[0].mxu0
  %1382 = vmatprep.mubr.f32.mxu0 0.0
  %1383 = vmatmul.mubr.f32.gmra.mrb[0].mxu0 %v1281
  %v1384 = vpop.f32.mrb[0].mxu0
  %v1385 = vadd.f32 0.0, %v1384
  %v1386 = vpop.f32.mrb[0].mxu0
  %1387 = vdwg.mxu0
  %v1389 = vsel %vm190, %v592, 0
  %v1392 = vsel %vm190, %v597, 0
  %v1395 = vsel %vm190, %v602, 0
  %v1398 = vsel %vm190, %v607, 0
  %v1401 = vsel %vm190, %v701, 0
  %v1404 = vsel %vm190, %v706, 0
  %v1407 = vsel %vm190, %v711, 0
  %v1410 = vsel %vm190, %v716, 0
  %1412 = vmatprep.subr.mxu0 0.0
  %1413 = vmatpush1.msra.mxu0 %v166
  %1414 = vmatprep.subr.mxu0 0.0
  %1415 = vmatpush1.msra.mxu0 %v167
  %1416 = vmatprep.subr.mxu0 0.0
  %1417 = vmatpush1.msra.mxu0 0.0
  %1418 = vmatprep.subr.mxu0 0.0
  %1419 = vmatpush1.msra.mxu0 0.0
  %1420 = vmatprep.subr.mxu0 0.0
  %1421 = vmatpush1.msra.mxu0 0.0
  %1422 = vmatprep.subr.mxu0 0.0
  %1423 = vmatpush1.msra.mxu0 0.0
  %1424 = vmatprep.subr.mxu0 0.0
  %1425 = vmatpush1.msra.mxu0 0.0
  %1426 = vmatprep.subr.mxu0 0.0
  %1427 = vmatpush1.msra.mxu0 0.0
  %1428 = vmatprep.subr.mxu0 0.0
  %1429 = vmatpush1.msra.mxu0 0.0
  %1430 = vmatprep.subr.mxu0 0.0
  %1431 = vmatpush1.msra.mxu0 0.0
  %1432 = vmatprep.subr.mxu0 0.0
  %1433 = vmatpush1.msra.mxu0 0.0
  %1434 = vmatprep.subr.mxu0 0.0
  %1435 = vmatpush1.msra.mxu0 0.0
  %1436 = vmatprep.subr.mxu0 0.0
  %1437 = vmatpush1.msra.mxu0 0.0
  %1438 = vmatprep.subr.mxu0 0.0
  %1439 = vmatpush1.msra.mxu0 0.0
  %1440 = vmatprep.subr.mxu0 0.0
  %1441 = vmatpush1.msra.mxu0 0.0
  %1442 = vmatprep.subr.mxu0 0.0
  %1443 = vmatpush1.msra.mxu0 0.0
  %1444 = vmatprep.subr.mxu0 0.0
  %1445 = vmatpush1.msra.mxu0 0.0
  %1446 = vmatprep.subr.mxu0 0.0
  %1447 = vmatpush1.msra.mxu0 0.0
  %1448 = vmatprep.subr.mxu0 0.0
  %1449 = vmatpush1.msra.mxu0 0.0
  %1450 = vmatprep.subr.mxu0 0.0
  %1451 = vmatpush1.msra.mxu0 0.0
  %1452 = vmatprep.subr.mxu0 0.0
  %1453 = vmatpush1.msra.mxu0 0.0
  %1454 = vmatprep.subr.mxu0 0.0
  %1455 = vmatpush1.msra.mxu0 0.0
  %1456 = vmatprep.subr.mxu0 0.0
  %1457 = vmatpush1.msra.mxu0 0.0
  %1458 = vmatprep.subr.mxu0 0.0
  %1459 = vmatpush1.msra.mxu0 0.0
  %1460 = vmatprep.subr.mxu0 0.0
  %1461 = vmatpush1.msra.mxu0 0.0
  %1462 = vmatprep.subr.mxu0 0.0
  %1463 = vmatpush1.msra.mxu0 0.0
  %1464 = vmatprep.subr.mxu0 0.0
  %1465 = vmatpush1.msra.mxu0 0.0
  %1466 = vmatprep.subr.mxu0 0.0
  %1467 = vmatpush1.msra.mxu0 0.0
  %1468 = vmatprep.subr.mxu0 0.0
  %1469 = vmatpush1.msra.mxu0 0.0
  %1470 = vmatprep.subr.mxu0 0.0
  %1471 = vmatpush1.msra.mxu0 0.0
  %1472 = vmatprep.subr.mxu0 0.0
  %1473 = vmatpush1.msra.mxu0 0.0
  %1474 = vmatprep.subr.mxu0 0.0
  %1475 = vmatpush1.msra.mxu0 0.0
  %1476 = vmatprep.mubr.f32.mxu0 0.0
  %1477 = vmatmul.mubr.f32.gmra.mrb[0].mxu0 %v1389
  %v1478 = vpop.f32.mrb[0].mxu0
  %v1479 = vadd.f32 %v1350, %v1478
  %v1480 = vpop.f32.mrb[0].mxu0
  %1481 = vmatprep.mubr.f32.mxu0 0.0
  %1482 = vmatmul.mubr.f32.gmra.mrb[0].mxu0 %v1392
  %v1483 = vpop.f32.mrb[0].mxu0
  %v1484 = vadd.f32 %v1355, %v1483
  %v1485 = vpop.f32.mrb[0].mxu0
  %1486 = vmatprep.mubr.f32.mxu0 0.0
  %1487 = vmatmul.mubr.f32.gmra.mrb[0].mxu0 %v1395
  %v1488 = vpop.f32.mrb[0].mxu0
  %v1489 = vadd.f32 %v1360, %v1488
  %v1490 = vpop.f32.mrb[0].mxu0
  %1491 = vmatprep.mubr.f32.mxu0 0.0
  %1492 = vmatmul.mubr.f32.gmra.mrb[0].mxu0 %v1398
  %v1493 = vpop.f32.mrb[0].mxu0
  %v1494 = vadd.f32 %v1365, %v1493
  %v1495 = vpop.f32.mrb[0].mxu0
  %1496 = vmatprep.mubr.f32.mxu0 0.0
  %1497 = vmatmul.mubr.f32.gmra.mrb[0].mxu0 %v1401
  %v1498 = vpop.f32.mrb[0].mxu0
  %v1499 = vadd.f32 %v1370, %v1498
  %v1500 = vpop.f32.mrb[0].mxu0
  %1501 = vmatprep.mubr.f32.mxu0 0.0
  %1502 = vmatmul.mubr.f32.gmra.mrb[0].mxu0 %v1404
  %v1503 = vpop.f32.mrb[0].mxu0
  %v1504 = vadd.f32 %v1375, %v1503
  %v1505 = vpop.f32.mrb[0].mxu0
  %1506 = vmatprep.mubr.f32.mxu0 0.0
  %1507 = vmatmul.mubr.f32.gmra.mrb[0].mxu0 %v1407
  %v1508 = vpop.f32.mrb[0].mxu0
  %v1509 = vadd.f32 %v1380, %v1508
  %v1510 = vpop.f32.mrb[0].mxu0
  %1511 = vmatprep.mubr.f32.mxu0 0.0
  %1512 = vmatmul.mubr.f32.gmra.mrb[0].mxu0 %v1410
  %v1513 = vpop.f32.mrb[0].mxu0
  %v1514 = vadd.f32 %v1385, %v1513
  %v1515 = vpop.f32.mrb[0].mxu0
  %1516 = vdwg.mxu0
  %v1517 = vlaneseq
  %v1518 = vshrl.u32 %v1517, 7
  %v1519 = vsub.s32 0, %v1518
  %v1520 = vrot.slane %v31, %v1519
  %v1521 = vadd.f32 %v1479, %v1520
  %v1522 = vadd.f32 %v1484, %v1520
  %v1523 = vadd.f32 %v1489, %v1520
  %v1524 = vadd.f32 %v1494, %v1520
  %v1525 = vadd.f32 %v1499, %v1520
  %v1526 = vadd.f32 %v1504, %v1520
  %v1527 = vadd.f32 %v1509, %v1520
  %v1528 = vadd.f32 %v1514, %v1520
  %v1529 = vadd.f32 %v23, %v1521
  %v1530 = vadd.f32 %v24, %v1522
  %v1531 = vadd.f32 %v25, %v1523
  %v1532 = vadd.f32 %v26, %v1524
  %v1533 = vadd.f32 %v27, %v1525
  %v1534 = vadd.f32 %v28, %v1526
  %v1535 = vadd.f32 %v29, %v1527
  %v1536 = vadd.f32 %v30, %v1528
  %v1537 = vsel %vm36, %v1529, 0.0
  %1538 = vadd.xlane.f32.xlu0 %v1537
  %v1539 = vpop.xlane.xlu0 %1538
  %v1540 = vsel %vm36, %v1530, 0.0
  %1541 = vadd.xlane.f32.xlu0 %v1540
  %v1542 = vpop.xlane.xlu0 %1541
  %v1543 = vsel %vm36, %v1531, 0.0
  %1544 = vadd.xlane.f32.xlu0 %v1543
  %v1545 = vpop.xlane.xlu0 %1544
  %v1546 = vsel %vm36, %v1532, 0.0
  %1547 = vadd.xlane.f32.xlu0 %v1546
  %v1548 = vpop.xlane.xlu0 %1547
  %v1549 = vsel %vm36, %v1533, 0.0
  %1550 = vadd.xlane.f32.xlu0 %v1549
  %v1551 = vpop.xlane.xlu0 %1550
  %v1552 = vsel %vm36, %v1534, 0.0
  %1553 = vadd.xlane.f32.xlu0 %v1552
  %v1554 = vpop.xlane.xlu0 %1553
  %v1555 = vsel %vm36, %v1535, 0.0
  %1556 = vadd.xlane.f32.xlu0 %v1555
  %v1557 = vpop.xlane.xlu0 %1556
  %v1558 = vsel %vm36, %v1536, 0.0
  %1559 = vadd.xlane.f32.xlu0 %v1558
  %v1560 = vpop.xlane.xlu0 %1559
  %v1561 = vrcp.pop 32.0
  %v1562 = vmul.f32 %v1539, %v1561
  %v1563 = vmul.f32 %v1542, %v1561
  %v1564 = vmul.f32 %v1545, %v1561
  %v1565 = vmul.f32 %v1548, %v1561
  %v1566 = vmul.f32 %v1551, %v1561
  %v1567 = vmul.f32 %v1554, %v1561
  %v1568 = vmul.f32 %v1557, %v1561
  %v1569 = vmul.f32 %v1560, %v1561
  %v1570 = vsub.f32 %v1529, %v1562
  %v1571 = vsub.f32 %v1530, %v1563
  %v1572 = vsub.f32 %v1531, %v1564
  %v1573 = vsub.f32 %v1532, %v1565
  %v1574 = vsub.f32 %v1533, %v1566
  %v1575 = vsub.f32 %v1534, %v1567
  %v1576 = vsub.f32 %v1535, %v1568
  %v1577 = vsub.f32 %v1536, %v1569
  %v1578 = vmul.f32 %v1570, %v1570
  %v1579 = vmul.f32 %v1571, %v1571
  %v1580 = vmul.f32 %v1572, %v1572
  %v1581 = vmul.f32 %v1573, %v1573
  %v1582 = vmul.f32 %v1574, %v1574
  %v1583 = vmul.f32 %v1575, %v1575
  %v1584 = vmul.f32 %v1576, %v1576
  %v1585 = vmul.f32 %v1577, %v1577
  %v1586 = vsel %vm36, %v1578, 0.0
  %1587 = vadd.xlane.f32.xlu0 %v1586
  %v1588 = vpop.xlane.xlu0 %1587
  %v1589 = vsel %vm36, %v1579, 0.0
  %1590 = vadd.xlane.f32.xlu0 %v1589
  %v1591 = vpop.xlane.xlu0 %1590
  %v1592 = vsel %vm36, %v1580, 0.0
  %1593 = vadd.xlane.f32.xlu0 %v1592
  %v1594 = vpop.xlane.xlu0 %1593
  %v1595 = vsel %vm36, %v1581, 0.0
  %1596 = vadd.xlane.f32.xlu0 %v1595
  %v1597 = vpop.xlane.xlu0 %1596
  %v1598 = vsel %vm36, %v1582, 0.0
  %1599 = vadd.xlane.f32.xlu0 %v1598
  %v1600 = vpop.xlane.xlu0 %1599
  %v1601 = vsel %vm36, %v1583, 0.0
  %1602 = vadd.xlane.f32.xlu0 %v1601
  %v1603 = vpop.xlane.xlu0 %1602
  %v1604 = vsel %vm36, %v1584, 0.0
  %1605 = vadd.xlane.f32.xlu0 %v1604
  %v1606 = vpop.xlane.xlu0 %1605
  %v1607 = vsel %vm36, %v1585, 0.0
  %1608 = vadd.xlane.f32.xlu0 %v1607
  %v1609 = vpop.xlane.xlu0 %1608
  %v1610 = vmul.f32 %v1588, %v1561
  %v1611 = vmul.f32 %v1591, %v1561
  %v1612 = vmul.f32 %v1594, %v1561
  %v1613 = vmul.f32 %v1597, %v1561
  %v1614 = vmul.f32 %v1600, %v1561
  %v1615 = vmul.f32 %v1603, %v1561
  %v1616 = vmul.f32 %v1606, %v1561
  %v1617 = vmul.f32 %v1609, %v1561
  %v1618 = vadd.f32 %v1610, 1e-06
  %v1619 = vadd.f32 %v1611, 1e-06
  %v1620 = vadd.f32 %v1612, 1e-06
  %v1621 = vadd.f32 %v1613, 1e-06
  %v1622 = vadd.f32 %v1614, 1e-06
  %v1623 = vadd.f32 %v1615, 1e-06
  %v1624 = vadd.f32 %v1616, 1e-06
  %v1625 = vadd.f32 %v1617, 1e-06
  %v1626 = vrsqrt.pop %v1618
  %v1627 = vrsqrt.pop %v1619
  %v1628 = vrsqrt.pop %v1620
  %v1629 = vrsqrt.pop %v1621
  %v1630 = vrsqrt.pop %v1622
  %v1631 = vrsqrt.pop %v1623
  %v1632 = vrsqrt.pop %v1624
  %v1633 = vrsqrt.pop %v1625
  %v1634 = vmul.f32 %v1570, %v1626
  %v1635 = vmul.f32 %v1571, %v1627
  %v1636 = vmul.f32 %v1572, %v1628
  %v1637 = vmul.f32 %v1573, %v1629
  %v1638 = vmul.f32 %v1574, %v1630
  %v1639 = vmul.f32 %v1575, %v1631
  %v1640 = vmul.f32 %v1576, %v1632
  %v1641 = vmul.f32 %v1577, %v1633
  %v1642 = vlaneseq
  %v1643 = vshrl.u32 %v1642, 7
  %v1644 = vsub.s32 1, %v1643
  %v1645 = vrot.slane %v31, %v1644
  %v1646 = vmul.f32 %v1634, %v1645
  %v1647 = vmul.f32 %v1635, %v1645
  %v1648 = vmul.f32 %v1636, %v1645
  %v1649 = vmul.f32 %v1637, %v1645
  %v1650 = vmul.f32 %v1638, %v1645
  %v1651 = vmul.f32 %v1639, %v1645
  %v1652 = vmul.f32 %v1640, %v1645
  %v1653 = vmul.f32 %v1641, %v1645
  %v1654 = vlaneseq
  %v1655 = vshrl.u32 %v1654, 7
  %v1656 = vsub.s32 2, %v1655
  %v1657 = vrot.slane %v31, %v1656
  %v1658 = vadd.f32 %v1646, %v1657
  %v1659 = vadd.f32 %v1647, %v1657
  %v1660 = vadd.f32 %v1648, %v1657
  %v1661 = vadd.f32 %v1649, %v1657
  %v1662 = vadd.f32 %v1650, %v1657
  %v1663 = vadd.f32 %v1651, %v1657
  %v1664 = vadd.f32 %v1652, %v1657
  %v1665 = vadd.f32 %v1653, %v1657
  %v1666 = vld [vmem:[%s3] sm:$0xff]
  %v1667 = vld [vmem:[%s3 + $0x8] sm:$0xff]
  %v1668 = vld [vmem:[%s3 + $0x10] sm:$0xff]
  %v1669 = vld [vmem:[%s3 + $0x18] sm:$0xff]
  %v1670 = vlaneseq
  %v1671 = vshrl.u32 %v1670, 7
  %v1672 = vsub.s32 3, %v1671
  %v1673 = vrot.slane %v31, %v1672
  %v1675 = vsel %vm36, %v1658, 0
  %v1678 = vsel %vm36, %v1659, 0
  %v1681 = vsel %vm36, %v1660, 0
  %v1684 = vsel %vm36, %v1661, 0
  %v1687 = vsel %vm36, %v1662, 0
  %v1690 = vsel %vm36, %v1663, 0
  %v1693 = vsel %vm36, %v1664, 0
  %v1696 = vsel %vm36, %v1665, 0
  %1698 = vmatprep.subr.mxu0 0.0
  %1699 = vmatpush1.msra.mxu0 %v1666
  %1700 = vmatprep.subr.mxu0 0.0
  %1701 = vmatpush1.msra.mxu0 %v1667
  %1702 = vmatprep.subr.mxu0 0.0
  %1703 = vmatpush1.msra.mxu0 %v1668
  %1704 = vmatprep.subr.mxu0 0.0
  %1705 = vmatpush1.msra.mxu0 %v1669
  %1706 = vmatprep.subr.mxu0 0.0
  %1707 = vmatpush1.msra.mxu0 0.0
  %1708 = vmatprep.subr.mxu0 0.0
  %1709 = vmatpush1.msra.mxu0 0.0
  %1710 = vmatprep.subr.mxu0 0.0
  %1711 = vmatpush1.msra.mxu0 0.0
  %1712 = vmatprep.subr.mxu0 0.0
  %1713 = vmatpush1.msra.mxu0 0.0
  %1714 = vmatprep.subr.mxu0 0.0
  %1715 = vmatpush1.msra.mxu0 0.0
  %1716 = vmatprep.subr.mxu0 0.0
  %1717 = vmatpush1.msra.mxu0 0.0
  %1718 = vmatprep.subr.mxu0 0.0
  %1719 = vmatpush1.msra.mxu0 0.0
  %1720 = vmatprep.subr.mxu0 0.0
  %1721 = vmatpush1.msra.mxu0 0.0
  %1722 = vmatprep.subr.mxu0 0.0
  %1723 = vmatpush1.msra.mxu0 0.0
  %1724 = vmatprep.subr.mxu0 0.0
  %1725 = vmatpush1.msra.mxu0 0.0
  %1726 = vmatprep.subr.mxu0 0.0
  %1727 = vmatpush1.msra.mxu0 0.0
  %1728 = vmatprep.subr.mxu0 0.0
  %1729 = vmatpush1.msra.mxu0 0.0
  %1730 = vmatprep.subr.mxu0 0.0
  %1731 = vmatpush1.msra.mxu0 0.0
  %1732 = vmatprep.subr.mxu0 0.0
  %1733 = vmatpush1.msra.mxu0 0.0
  %1734 = vmatprep.subr.mxu0 0.0
  %1735 = vmatpush1.msra.mxu0 0.0
  %1736 = vmatprep.subr.mxu0 0.0
  %1737 = vmatpush1.msra.mxu0 0.0
  %1738 = vmatprep.subr.mxu0 0.0
  %1739 = vmatpush1.msra.mxu0 0.0
  %1740 = vmatprep.subr.mxu0 0.0
  %1741 = vmatpush1.msra.mxu0 0.0
  %1742 = vmatprep.subr.mxu0 0.0
  %1743 = vmatpush1.msra.mxu0 0.0
  %1744 = vmatprep.subr.mxu0 0.0
  %1745 = vmatpush1.msra.mxu0 0.0
  %1746 = vmatprep.subr.mxu0 0.0
  %1747 = vmatpush1.msra.mxu0 0.0
  %1748 = vmatprep.subr.mxu0 0.0
  %1749 = vmatpush1.msra.mxu0 0.0
  %1750 = vmatprep.subr.mxu0 0.0
  %1751 = vmatpush1.msra.mxu0 0.0
  %1752 = vmatprep.subr.mxu0 0.0
  %1753 = vmatpush1.msra.mxu0 0.0
  %1754 = vmatprep.subr.mxu0 0.0
  %1755 = vmatpush1.msra.mxu0 0.0
  %1756 = vmatprep.subr.mxu0 0.0
  %1757 = vmatpush1.msra.mxu0 0.0
  %1758 = vmatprep.subr.mxu0 0.0
  %1759 = vmatpush1.msra.mxu0 0.0
  %1760 = vmatprep.subr.mxu0 0.0
  %1761 = vmatpush1.msra.mxu0 0.0
  %1762 = vmatprep.mubr.f32.mxu0 0.0
  %1763 = vmatmul.mubr.f32.gmra.mrb[0].mxu0 %v1675
  %v1764 = vpop.f32.mrb[0].mxu0
  %v1765 = vadd.f32 %v1673, %v1764
  %v1766 = vpop.f32.mrb[0].mxu0
  %1767 = vmatprep.mubr.f32.mxu0 0.0
  %1768 = vmatmul.mubr.f32.gmra.mrb[0].mxu0 %v1678
  %v1769 = vpop.f32.mrb[0].mxu0
  %v1770 = vadd.f32 %v1673, %v1769
  %v1771 = vpop.f32.mrb[0].mxu0
  %1772 = vmatprep.mubr.f32.mxu0 0.0
  %1773 = vmatmul.mubr.f32.gmra.mrb[0].mxu0 %v1681
  %v1774 = vpop.f32.mrb[0].mxu0
  %v1775 = vadd.f32 %v1673, %v1774
  %v1776 = vpop.f32.mrb[0].mxu0
  %1777 = vmatprep.mubr.f32.mxu0 0.0
  %1778 = vmatmul.mubr.f32.gmra.mrb[0].mxu0 %v1684
  %v1779 = vpop.f32.mrb[0].mxu0
  %v1780 = vadd.f32 %v1673, %v1779
  %v1781 = vpop.f32.mrb[0].mxu0
  %1782 = vmatprep.mubr.f32.mxu0 0.0
  %1783 = vmatmul.mubr.f32.gmra.mrb[0].mxu0 %v1687
  %v1784 = vpop.f32.mrb[0].mxu0
  %v1785 = vadd.f32 %v1673, %v1784
  %v1786 = vpop.f32.mrb[0].mxu0
  %1787 = vmatprep.mubr.f32.mxu0 0.0
  %1788 = vmatmul.mubr.f32.gmra.mrb[0].mxu0 %v1690
  %v1789 = vpop.f32.mrb[0].mxu0
  %v1790 = vadd.f32 %v1673, %v1789
  %v1791 = vpop.f32.mrb[0].mxu0
  %1792 = vmatprep.mubr.f32.mxu0 0.0
  %1793 = vmatmul.mubr.f32.gmra.mrb[0].mxu0 %v1693
  %v1794 = vpop.f32.mrb[0].mxu0
  %v1795 = vadd.f32 %v1673, %v1794
  %v1796 = vpop.f32.mrb[0].mxu0
  %1797 = vmatprep.mubr.f32.mxu0 0.0
  %1798 = vmatmul.mubr.f32.gmra.mrb[0].mxu0 %v1696
  %v1799 = vpop.f32.mrb[0].mxu0
  %v1800 = vadd.f32 %v1673, %v1799
  %v1801 = vpop.f32.mrb[0].mxu0
  %1802 = vdwg.mxu0
  %v1803 = vmul.f32 %v1765, 0.5
  %v1804 = vmul.f32 %v1770, 0.5
  %v1805 = vmul.f32 %v1775, 0.5
  %v1806 = vmul.f32 %v1780, 0.5
  %v1807 = vmul.f32 %v1785, 0.5
  %v1808 = vmul.f32 %v1790, 0.5
  %v1809 = vmul.f32 %v1795, 0.5
  %v1810 = vmul.f32 %v1800, 0.5
  %v1811 = vmul.f32 %v1765, 0.70710677
  %v1812 = vmul.f32 %v1770, 0.70710677
  %v1813 = vmul.f32 %v1775, 0.70710677
  %v1814 = vmul.f32 %v1780, 0.70710677
  %v1815 = vmul.f32 %v1785, 0.70710677
  %v1816 = vmul.f32 %v1790, 0.70710677
  %v1817 = vmul.f32 %v1795, 0.70710677
  %v1818 = vmul.f32 %v1800, 0.70710677
  %v1819 = verf.f32.pop %v1811
  %v1820 = verf.f32.pop %v1812
  %v1821 = verf.f32.pop %v1813
  %v1822 = verf.f32.pop %v1814
  %v1823 = verf.f32.pop %v1815
  %v1824 = verf.f32.pop %v1816
  %v1825 = verf.f32.pop %v1817
  %v1826 = verf.f32.pop %v1818
  %v1827 = vadd.f32 %v1819, 1.0
  %v1828 = vadd.f32 %v1820, 1.0
  %v1829 = vadd.f32 %v1821, 1.0
  %v1830 = vadd.f32 %v1822, 1.0
  %v1831 = vadd.f32 %v1823, 1.0
  %v1832 = vadd.f32 %v1824, 1.0
  %v1833 = vadd.f32 %v1825, 1.0
  %v1834 = vadd.f32 %v1826, 1.0
  %v1835 = vmul.f32 %v1803, %v1827
  %v1836 = vmul.f32 %v1804, %v1828
  %v1837 = vmul.f32 %v1805, %v1829
  %v1838 = vmul.f32 %v1806, %v1830
  %v1839 = vmul.f32 %v1807, %v1831
  %v1840 = vmul.f32 %v1808, %v1832
  %v1841 = vmul.f32 %v1809, %v1833
  %v1842 = vmul.f32 %v1810, %v1834
  %v1843 = vld [vmem:[%s4] sm:$0xff]
  %v1844 = vld [vmem:[%s4 + $0x8] sm:$0xff]
  %v1845 = vld [vmem:[%s4 + $0x10] sm:$0xff]
  %v1846 = vld [vmem:[%s4 + $0x18] sm:$0xff]
  %v1847 = vld [vmem:[%s4 + $0x20] sm:$0xff]
  %v1848 = vld [vmem:[%s4 + $0x28] sm:$0xff]
  %v1849 = vld [vmem:[%s4 + $0x30] sm:$0xff]
  %v1850 = vld [vmem:[%s4 + $0x38] sm:$0xff]
  %v1851 = vld [vmem:[%s4 + $0x40] sm:$0xff]
  %v1852 = vld [vmem:[%s4 + $0x48] sm:$0xff]
  %v1853 = vld [vmem:[%s4 + $0x50] sm:$0xff]
  %v1854 = vld [vmem:[%s4 + $0x58] sm:$0xff]
  %v1855 = vld [vmem:[%s4 + $0x60] sm:$0xff]
  %v1856 = vld [vmem:[%s4 + $0x68] sm:$0xff]
  %v1857 = vld [vmem:[%s4 + $0x70] sm:$0xff]
  %v1858 = vld [vmem:[%s4 + $0x78] sm:$0xff]
  %v1859 = vlaneseq
  %v1860 = vshrl.u32 %v1859, 7
  %v1861 = vsub.s32 4, %v1860
  %v1862 = vrot.slane %v31, %v1861
  %1863 = vmatprep.subr.mxu0 0.0
  %1864 = vmatpush1.msra.mxu0 %v1843
  %1865 = vmatprep.subr.mxu0 0.0
  %1866 = vmatpush1.msra.mxu0 %v1844
  %1867 = vmatprep.subr.mxu0 0.0
  %1868 = vmatpush1.msra.mxu0 %v1845
  %1869 = vmatprep.subr.mxu0 0.0
  %1870 = vmatpush1.msra.mxu0 %v1846
  %1871 = vmatprep.subr.mxu0 0.0
  %1872 = vmatpush1.msra.mxu0 %v1847
  %1873 = vmatprep.subr.mxu0 0.0
  %1874 = vmatpush1.msra.mxu0 %v1848
  %1875 = vmatprep.subr.mxu0 0.0
  %1876 = vmatpush1.msra.mxu0 %v1849
  %1877 = vmatprep.subr.mxu0 0.0
  %1878 = vmatpush1.msra.mxu0 %v1850
  %1879 = vmatprep.subr.mxu0 0.0
  %1880 = vmatpush1.msra.mxu0 %v1851
  %1881 = vmatprep.subr.mxu0 0.0
  %1882 = vmatpush1.msra.mxu0 %v1852
  %1883 = vmatprep.subr.mxu0 0.0
  %1884 = vmatpush1.msra.mxu0 %v1853
  %1885 = vmatprep.subr.mxu0 0.0
  %1886 = vmatpush1.msra.mxu0 %v1854
  %1887 = vmatprep.subr.mxu0 0.0
  %1888 = vmatpush1.msra.mxu0 %v1855
  %1889 = vmatprep.subr.mxu0 0.0
  %1890 = vmatpush1.msra.mxu0 %v1856
  %1891 = vmatprep.subr.mxu0 0.0
  %1892 = vmatpush1.msra.mxu0 %v1857
  %1893 = vmatprep.subr.mxu0 0.0
  %1894 = vmatpush1.msra.mxu0 %v1858
  %1895 = vmatprep.subr.mxu0 0.0
  %1896 = vmatpush1.msra.mxu0 0.0
  %1897 = vmatprep.subr.mxu0 0.0
  %1898 = vmatpush1.msra.mxu0 0.0
  %1899 = vmatprep.subr.mxu0 0.0
  %1900 = vmatpush1.msra.mxu0 0.0
  %1901 = vmatprep.subr.mxu0 0.0
  %1902 = vmatpush1.msra.mxu0 0.0
  %1903 = vmatprep.subr.mxu0 0.0
  %1904 = vmatpush1.msra.mxu0 0.0
  %1905 = vmatprep.subr.mxu0 0.0
  %1906 = vmatpush1.msra.mxu0 0.0
  %1907 = vmatprep.subr.mxu0 0.0
  %1908 = vmatpush1.msra.mxu0 0.0
  %1909 = vmatprep.subr.mxu0 0.0
  %1910 = vmatpush1.msra.mxu0 0.0
  %1911 = vmatprep.subr.mxu0 0.0
  %1912 = vmatpush1.msra.mxu0 0.0
  %1913 = vmatprep.subr.mxu0 0.0
  %1914 = vmatpush1.msra.mxu0 0.0
  %1915 = vmatprep.subr.mxu0 0.0
  %1916 = vmatpush1.msra.mxu0 0.0
  %1917 = vmatprep.subr.mxu0 0.0
  %1918 = vmatpush1.msra.mxu0 0.0
  %1919 = vmatprep.subr.mxu0 0.0
  %1920 = vmatpush1.msra.mxu0 0.0
  %1921 = vmatprep.subr.mxu0 0.0
  %1922 = vmatpush1.msra.mxu0 0.0
  %1923 = vmatprep.subr.mxu0 0.0
  %1924 = vmatpush1.msra.mxu0 0.0
  %1925 = vmatprep.subr.mxu0 0.0
  %1926 = vmatpush1.msra.mxu0 0.0
  %1927 = vmatprep.mubr.f32.mxu0 0.0
  %1928 = vmatmul.mubr.f32.gmra.mrb[0].mxu0 %v1835
  %v1929 = vpop.f32.mrb[0].mxu0
  %v1930 = vadd.f32 %v1862, %v1929
  %v1931 = vpop.f32.mrb[0].mxu0
  %1932 = vmatprep.mubr.f32.mxu0 0.0
  %1933 = vmatmul.mubr.f32.gmra.mrb[0].mxu0 %v1836
  %v1934 = vpop.f32.mrb[0].mxu0
  %v1935 = vadd.f32 %v1862, %v1934
  %v1936 = vpop.f32.mrb[0].mxu0
  %1937 = vmatprep.mubr.f32.mxu0 0.0
  %1938 = vmatmul.mubr.f32.gmra.mrb[0].mxu0 %v1837
  %v1939 = vpop.f32.mrb[0].mxu0
  %v1940 = vadd.f32 %v1862, %v1939
  %v1941 = vpop.f32.mrb[0].mxu0
  %1942 = vmatprep.mubr.f32.mxu0 0.0
  %1943 = vmatmul.mubr.f32.gmra.mrb[0].mxu0 %v1838
  %v1944 = vpop.f32.mrb[0].mxu0
  %v1945 = vadd.f32 %v1862, %v1944
  %v1946 = vpop.f32.mrb[0].mxu0
  %1947 = vmatprep.mubr.f32.mxu0 0.0
  %1948 = vmatmul.mubr.f32.gmra.mrb[0].mxu0 %v1839
  %v1949 = vpop.f32.mrb[0].mxu0
  %v1950 = vadd.f32 %v1862, %v1949
  %v1951 = vpop.f32.mrb[0].mxu0
  %1952 = vmatprep.mubr.f32.mxu0 0.0
  %1953 = vmatmul.mubr.f32.gmra.mrb[0].mxu0 %v1840
  %v1954 = vpop.f32.mrb[0].mxu0
  %v1955 = vadd.f32 %v1862, %v1954
  %v1956 = vpop.f32.mrb[0].mxu0
  %1957 = vmatprep.mubr.f32.mxu0 0.0
  %1958 = vmatmul.mubr.f32.gmra.mrb[0].mxu0 %v1841
  %v1959 = vpop.f32.mrb[0].mxu0
  %v1960 = vadd.f32 %v1862, %v1959
  %v1961 = vpop.f32.mrb[0].mxu0
  %1962 = vmatprep.mubr.f32.mxu0 0.0
  %1963 = vmatmul.mubr.f32.gmra.mrb[0].mxu0 %v1842
  %v1964 = vpop.f32.mrb[0].mxu0
  %v1965 = vadd.f32 %v1862, %v1964
  %v1966 = vpop.f32.mrb[0].mxu0
  %1967 = vdwg.mxu0
  %v1968 = vadd.f32 %v1658, %v1930
  %v1969 = vadd.f32 %v1659, %v1935
  %v1970 = vadd.f32 %v1660, %v1940
  %v1971 = vadd.f32 %v1661, %v1945
  %v1972 = vadd.f32 %v1662, %v1950
  %v1973 = vadd.f32 %v1663, %v1955
  %v1974 = vadd.f32 %v1664, %v1960
  %v1975 = vadd.f32 %v1665, %v1965
  %v1976 = vsel %vm36, %v1968, 0.0
  %1977 = vadd.xlane.f32.xlu0 %v1976
  %v1978 = vpop.xlane.xlu0 %1977
  %v1979 = vsel %vm36, %v1969, 0.0
  %1980 = vadd.xlane.f32.xlu0 %v1979
  %v1981 = vpop.xlane.xlu0 %1980
  %v1982 = vsel %vm36, %v1970, 0.0
  %1983 = vadd.xlane.f32.xlu0 %v1982
  %v1984 = vpop.xlane.xlu0 %1983
  %v1985 = vsel %vm36, %v1971, 0.0
  %1986 = vadd.xlane.f32.xlu0 %v1985
  %v1987 = vpop.xlane.xlu0 %1986
  %v1988 = vsel %vm36, %v1972, 0.0
  %1989 = vadd.xlane.f32.xlu0 %v1988
  %v1990 = vpop.xlane.xlu0 %1989
  %v1991 = vsel %vm36, %v1973, 0.0
  %1992 = vadd.xlane.f32.xlu0 %v1991
  %v1993 = vpop.xlane.xlu0 %1992
  %v1994 = vsel %vm36, %v1974, 0.0
  %1995 = vadd.xlane.f32.xlu0 %v1994
  %v1996 = vpop.xlane.xlu0 %1995
  %v1997 = vsel %vm36, %v1975, 0.0
  %1998 = vadd.xlane.f32.xlu0 %v1997
  %v1999 = vpop.xlane.xlu0 %1998
  %v2000 = vmul.f32 %v1978, %v1561
  %v2001 = vmul.f32 %v1981, %v1561
  %v2002 = vmul.f32 %v1984, %v1561
  %v2003 = vmul.f32 %v1987, %v1561
  %v2004 = vmul.f32 %v1990, %v1561
  %v2005 = vmul.f32 %v1993, %v1561
  %v2006 = vmul.f32 %v1996, %v1561
  %v2007 = vmul.f32 %v1999, %v1561
  %v2008 = vsub.f32 %v1968, %v2000
  %v2009 = vsub.f32 %v1969, %v2001
  %v2010 = vsub.f32 %v1970, %v2002
  %v2011 = vsub.f32 %v1971, %v2003
  %v2012 = vsub.f32 %v1972, %v2004
  %v2013 = vsub.f32 %v1973, %v2005
  %v2014 = vsub.f32 %v1974, %v2006
  %v2015 = vsub.f32 %v1975, %v2007
  %v2016 = vmul.f32 %v2008, %v2008
  %v2017 = vmul.f32 %v2009, %v2009
  %v2018 = vmul.f32 %v2010, %v2010
  %v2019 = vmul.f32 %v2011, %v2011
  %v2020 = vmul.f32 %v2012, %v2012
  %v2021 = vmul.f32 %v2013, %v2013
  %v2022 = vmul.f32 %v2014, %v2014
  %v2023 = vmul.f32 %v2015, %v2015
  %v2024 = vsel %vm36, %v2016, 0.0
  %2025 = vadd.xlane.f32.xlu0 %v2024
  %v2026 = vpop.xlane.xlu0 %2025
  %v2027 = vsel %vm36, %v2017, 0.0
  %2028 = vadd.xlane.f32.xlu0 %v2027
  %v2029 = vpop.xlane.xlu0 %2028
  %v2030 = vsel %vm36, %v2018, 0.0
  %2031 = vadd.xlane.f32.xlu0 %v2030
  %v2032 = vpop.xlane.xlu0 %2031
  %v2033 = vsel %vm36, %v2019, 0.0
  %2034 = vadd.xlane.f32.xlu0 %v2033
  %v2035 = vpop.xlane.xlu0 %2034
  %v2036 = vsel %vm36, %v2020, 0.0
  %2037 = vadd.xlane.f32.xlu0 %v2036
  %v2038 = vpop.xlane.xlu0 %2037
  %v2039 = vsel %vm36, %v2021, 0.0
  %2040 = vadd.xlane.f32.xlu0 %v2039
  %v2041 = vpop.xlane.xlu0 %2040
  %v2042 = vsel %vm36, %v2022, 0.0
  %2043 = vadd.xlane.f32.xlu0 %v2042
  %v2044 = vpop.xlane.xlu0 %2043
  %v2045 = vsel %vm36, %v2023, 0.0
  %2046 = vadd.xlane.f32.xlu0 %v2045
  %v2047 = vpop.xlane.xlu0 %2046
  %v2048 = vmul.f32 %v2026, %v1561
  %v2049 = vmul.f32 %v2029, %v1561
  %v2050 = vmul.f32 %v2032, %v1561
  %v2051 = vmul.f32 %v2035, %v1561
  %v2052 = vmul.f32 %v2038, %v1561
  %v2053 = vmul.f32 %v2041, %v1561
  %v2054 = vmul.f32 %v2044, %v1561
  %v2055 = vmul.f32 %v2047, %v1561
  %v2056 = vadd.f32 %v2048, 1e-06
  %v2057 = vadd.f32 %v2049, 1e-06
  %v2058 = vadd.f32 %v2050, 1e-06
  %v2059 = vadd.f32 %v2051, 1e-06
  %v2060 = vadd.f32 %v2052, 1e-06
  %v2061 = vadd.f32 %v2053, 1e-06
  %v2062 = vadd.f32 %v2054, 1e-06
  %v2063 = vadd.f32 %v2055, 1e-06
  %v2064 = vrsqrt.pop %v2056
  %v2065 = vrsqrt.pop %v2057
  %v2066 = vrsqrt.pop %v2058
  %v2067 = vrsqrt.pop %v2059
  %v2068 = vrsqrt.pop %v2060
  %v2069 = vrsqrt.pop %v2061
  %v2070 = vrsqrt.pop %v2062
  %v2071 = vrsqrt.pop %v2063
  %v2072 = vmul.f32 %v2008, %v2064
  %v2073 = vmul.f32 %v2009, %v2065
  %v2074 = vmul.f32 %v2010, %v2066
  %v2075 = vmul.f32 %v2011, %v2067
  %v2076 = vmul.f32 %v2012, %v2068
  %v2077 = vmul.f32 %v2013, %v2069
  %v2078 = vmul.f32 %v2014, %v2070
  %v2079 = vmul.f32 %v2015, %v2071
  %v2080 = vlaneseq
  %v2081 = vshrl.u32 %v2080, 7
  %v2082 = vsub.s32 5, %v2081
  %v2083 = vrot.slane %v31, %v2082
  %v2084 = vmul.f32 %v2072, %v2083
  %v2085 = vmul.f32 %v2073, %v2083
  %v2086 = vmul.f32 %v2074, %v2083
  %v2087 = vmul.f32 %v2075, %v2083
  %v2088 = vmul.f32 %v2076, %v2083
  %v2089 = vmul.f32 %v2077, %v2083
  %v2090 = vmul.f32 %v2078, %v2083
  %v2091 = vmul.f32 %v2079, %v2083
  %v2092 = vlaneseq
  %v2093 = vshrl.u32 %v2092, 7
  %v2094 = vsub.s32 6, %v2093
  %v2095 = vrot.slane %v31, %v2094
  %v2096 = vadd.f32 %v2084, %v2095
  %v2097 = vadd.f32 %v2085, %v2095
  %v2098 = vadd.f32 %v2086, %v2095
  %v2099 = vadd.f32 %v2087, %v2095
  %v2100 = vadd.f32 %v2088, %v2095
  %v2101 = vadd.f32 %v2089, %v2095
  %v2102 = vadd.f32 %v2090, %v2095
  %v2103 = vadd.f32 %v2091, %v2095
  %2104 = vst.msk [vmem:[%s6] sm:$0xff] %vm36, %v2096
  %2105 = vst.msk [vmem:[%s6 + $0x8] sm:$0xff] %vm36, %v2097
  %2106 = vst.msk [vmem:[%s6 + $0x10] sm:$0xff] %vm36, %v2098
  %2107 = vst.msk [vmem:[%s6 + $0x18] sm:$0xff] %vm36, %v2099
  %2108 = vst.msk [vmem:[%s6 + $0x20] sm:$0xff] %vm36, %v2100
  %2109 = vst.msk [vmem:[%s6 + $0x28] sm:$0xff] %vm36, %v2101
  %2110 = vst.msk [vmem:[%s6 + $0x30] sm:$0xff] %vm36, %v2102
  %2111 = vst.msk [vmem:[%s6 + $0x38] sm:$0xff] %vm36, %v2103
  // Predicated region
  $region26: #{tpu_custom_call.1} parent=0 // pred_check
    _
  $region27: #{tpu_custom_call.1} parent=0 // pred_check_branch
    %2113 = sbr.rel (0) target = $region29
  $region28: #{tpu_custom_call.1} parent=0 // pred_region
    _
  $region29: #{tpu_custom_call.1} parent=0 // pred_fallthru
    _
  // Predicated region
  $region30: #{tpu_custom_call.1} parent=0 // pred_check
    _
  $region31: #{tpu_custom_call.1} parent=0 // pred_check_branch
    %2115 = sbr.rel (0) target = $region33
  $region32: #{tpu_custom_call.1} parent=0 // pred_region
    _
  $region33: #{tpu_custom_call.1} parent=0 // pred_fallthru
    _

</llo_original>
